<compile_context>
chip_gen: v5e
topology: v5e:2x2
jax: 0.10.0
libtpu: 0.0.40
codegen_flags: <defaults>
</compile_context>

<pallas_src>
import functools

import numpy as np
import jax
import jax.numpy as jnp
from jax.experimental import pallas as pl
from jax.experimental.pallas import tpu as pltpu

TM = 256          # stage-1 patch rows per grid step (fits v7x 32MiB scoped VMEM easily)
LANES = 128       # pad channel / contraction dims to multiples of the lane width
BN_EPS = 1e-5


def _round_up(x, m):
    return (x + m - 1) // m * m


# --------------------------- Pallas kernels ---------------------------------
def _stage1_kernel(p_ref, w_ref, b_ref, y_ref, id_ref, *, co):
    """conv1 + downsample conv as one lane-dense GEMM; BN scale pre-folded.

    p_ref : (TM, Kp)     bf16 im2col patches of x
    w_ref : (Kp, 2*co)   bf16 [w1*bn1_scale | w_ds*bn_ds_scale]
    b_ref : (1, 2*co)    f32  [bn1_shift    | bn_ds_shift]
    y_ref : (TM, co)     f32  relu(conv1 + bn1)      (feeds conv2)
    id_ref: (TM, co)     bf16 conv_ds + bn_ds        (residual branch)
    """
    a = jnp.dot(p_ref[...], w_ref[...],
                preferred_element_type=jnp.float32) + b_ref[...]
    y_ref[...] = jnp.maximum(a[:, :co], 0.0)
    id_ref[...] = a[:, co:].astype(id_ref.dtype)


def _stage1(p1, w1d, b1d, co):
    pp, kp = p1.shape
    co2 = w1d.shape[1]
    return pl.pallas_call(
        functools.partial(_stage1_kernel, co=co),
        out_shape=(jax.ShapeDtypeStruct((pp, co), jnp.float32),
                   jax.ShapeDtypeStruct((pp, co), jnp.bfloat16)),
        grid_spec=pltpu.PrefetchScalarGridSpec(
            num_scalar_prefetch=0,
            grid=(pp // TM,),
            in_specs=[pl.BlockSpec((TM, kp), lambda i: (i, 0)),
                      pl.BlockSpec((kp, co2), lambda i: (0, 0)),
                      pl.BlockSpec((1, co2), lambda i: (0, 0))],
            out_specs=(pl.BlockSpec((TM, co), lambda i: (i, 0)),
                       pl.BlockSpec((TM, co), lambda i: (i, 0)))),
        compiler_params=pltpu.CompilerParams(dimension_semantics=("parallel",)),
    )(p1, w1d, b1d)


def _stage2(y1p, w2k, b2v, idm, *, nr, wp):
    """conv2 + bn2 + residual add + relu with the tap gather done on-chip.

    Grid = (N, D_out, 3 depth taps); the 9 in-plane taps are static row-shifted
    slices of the padded, row-flattened y1 plane resident in VMEM.
    """
    n, d1p, rps, cmid = y1p.shape
    d1 = d1p - 2
    co = w2k.shape[-1]

    def kernel(y_ref, w_ref, b_ref, id_ref, o_ref, acc_ref):
        kd = pl.program_id(2)

        @pl.when(kd == 0)
        def _init():
            acc_ref[...] = jnp.zeros_like(acc_ref)

        plane = y_ref[0, 0]                     # (rps, cmid) f32, one depth plane
        acc = acc_ref[...]
        for t in range(9):                      # in-plane taps gathered on-chip
            kh, kw = divmod(t, 3)
            s = kh * wp + kw                    # static row shift in padded plane
            acc = acc + jnp.dot(plane[s:s + nr, :], w_ref[0, t],
                                preferred_element_type=jnp.float32)
        acc_ref[...] = acc

        @pl.when(kd == pl.num_programs(2) - 1)
        def _finalize():
            o_ref[0, 0] = jnp.maximum(
                acc_ref[...] + b_ref[...] + id_ref[0, 0].astype(jnp.float32), 0.0)

    return pl.pallas_call(
        kernel,
        out_shape=jax.ShapeDtypeStruct((n, d1, nr, co), jnp.float32),
        grid_spec=pltpu.PrefetchScalarGridSpec(
            num_scalar_prefetch=0,
            grid=(n, d1, 3),
            in_specs=[
                pl.BlockSpec((1, 1, rps, cmid), lambda b, d, k: (b, d + k, 0, 0)),
                pl.BlockSpec((1, 9, cmid, co), lambda b, d, k: (k, 0, 0, 0)),
                pl.BlockSpec((1, co), lambda b, d, k: (0, 0)),
                pl.BlockSpec((1, 1, nr, co), lambda b, d, k: (b, d, 0, 0)),
            ],
            out_specs=pl.BlockSpec((1, 1, nr, co), lambda b, d, k: (b, d, 0, 0)),
            scratch_shapes=[pltpu.VMEM((nr, co), jnp.float32)]),
        compiler_params=pltpu.CompilerParams(
            dimension_semantics=("parallel", "parallel", "arbitrary")),
    )(y1p, w2k, b2v, idm)


# --------------------------- JAX glue ----------------------------------------
def _im2col3d(x, k, stride, pad):
    """x: (N, D, H, W, C) -> (N*Do*Ho*Wo, k^3*C), tap-major / channel-minor cols."""
    # TODO(synk): for stride=1 this wrapper im2col (27x blowup of x) could also be
    # replaced by the stage-2-style in-kernel tap gather; kept here so arbitrary
    # conv1 strides remain supported.
    if pad:
        x = jnp.pad(x, ((0, 0), (pad, pad), (pad, pad), (pad, pad), (0, 0)))
    n, d, h, w, c = x.shape
    do = (d - k) // stride + 1
    ho = (h - k) // stride + 1
    wo = (w - k) // stride + 1
    cols = []
    for kd in range(k):
        for kh in range(k):
            for kw in range(k):
                sl = x[:, kd:kd + (do - 1) * stride + 1:stride,
                          kh:kh + (ho - 1) * stride + 1:stride,
                          kw:kw + (wo - 1) * stride + 1:stride, :]
                cols.append(sl.reshape(n * do * ho * wo, c))
    return jnp.concatenate(cols, axis=1), (n, do, ho, wo)


def _wmat(w, scale):
    """Conv3d weight (Co,Ci,3,3,3) * per-Co BN scale -> GEMM matrix (27*Ci, Co)."""
    co, ci = w.shape[0], w.shape[1]
    wf = w * scale[:, None, None, None, None]
    return jnp.transpose(wf, (2, 3, 4, 1, 0)).reshape(27 * ci, co)


def _fold_bn(gamma, beta, mean, var):
    scale = gamma / jnp.sqrt(var + BN_EPS)
    shift = beta - mean * scale
    return scale, shift


def _pad2(a, rows, cols):
    return jnp.pad(a, ((0, rows - a.shape[0]), (0, cols - a.shape[1])))


@functools.partial(jax.jit, static_argnames=("stride",))
def block_forward(x_ncdhw, params, stride=1):
    x = jnp.transpose(x_ncdhw, (0, 2, 3, 4, 1)).astype(jnp.float32)   # NDHWC
    n = x.shape[0]
    cmid = params["w1"].shape[0]
    co = _round_up(cmid, LANES)

    s1, b1 = _fold_bn(*params["bn1"])
    s2, b2 = _fold_bn(*params["bn2"])
    sd, bd = _fold_bn(*params["bn_ds"])

    # ---- stage 1: conv1+bn1+relu and downsample conv+bn, one fused GEMM ----
    p1, (_, d1, h1, w1) = _im2col3d(x, 3, stride, 0)
    k1 = p1.shape[1]
    k1p = _round_up(k1, LANES)
    p_rows = n * d1 * h1 * w1
    pp = _round_up(p_rows, 2 * TM)          # even tile count (v7x: 2 TensorCores)
    p1 = jnp.pad(p1, ((0, pp - p_rows), (0, k1p - k1))).astype(jnp.bfloat16)

    w1m = _pad2(_wmat(params["w1"], s1), k1p, co)
    wdm = _pad2(_wmat(params["w_ds"], sd), k1p, co)
    w1d = jnp.concatenate([w1m, wdm], axis=1).astype(jnp.bfloat16)    # (k1p, 2*co)
    b1d = jnp.concatenate([jnp.pad(b1, (0, co - cmid)),
                           jnp.pad(bd, (0, co - cmid))]).reshape(1, 2 * co)

    y1f, idf = _stage1(p1, w1d, b1d, co)

    # ---- stage 2: conv2+bn2 + residual + relu, taps gathered on-chip ----
    hp, wp = h1 + 2, w1 + 2
    nr = h1 * wp                    # accumulator rows (W padded to wp; extras dropped)
    rp = hp * wp
    rps = _round_up(rp + 2, 8)      # slack rows so every tap slice stays in-bounds

    y1 = y1f[:p_rows, :cmid].reshape(n, d1, h1, w1, cmid)
    y1p = jnp.pad(y1, ((0, 0), (1, 1), (1, 1), (1, 1), (0, 0)))
    y1p = y1p.reshape(n, d1 + 2, rp, cmid)
    y1p = jnp.pad(y1p, ((0, 0), (0, 0), (0, rps - rp), (0, 0)))       # f32

    idm = idf[:p_rows].reshape(n, d1, h1, w1, co)
    idm = jnp.pad(idm, ((0, 0), (0, 0), (0, 0), (0, wp - w1), (0, 0)))
    idm = idm.reshape(n, d1, nr, co)                                  # bf16

    w2f = params["w2"] * s2[:, None, None, None, None]                # fold bn2 scale
    w2t = jnp.transpose(w2f, (2, 3, 4, 1, 0))                         # (3,3,3,Ci,Co)
    w2t = jnp.pad(w2t, ((0, 0),) * 4 + ((0, co - cmid),))
    w2k = w2t.reshape(3, 9, cmid, co)                                 # f32, per-tap mats
    b2v = jnp.pad(b2, (0, co - cmid)).reshape(1, co)

    out2 = _stage2(y1p, w2k, b2v, idm, nr=nr, wp=wp)                  # (n, d1, nr, co)
    out = out2.reshape(n, d1, h1, wp, co)[:, :, :, :w1, :cmid]
    return jnp.transpose(out, (0, 4, 1, 2, 3))                        # back to NCDHW


# --------------------------- params & reference -------------------------------
def make_params(key, cin, cmid):
    keys = jax.random.split(key, 6)

    def conv_w(k, co, ci):
        fan_in = ci * 27
        return jax.random.normal(k, (co, ci, 3, 3, 3), jnp.float32) / np.sqrt(fan_in)

    def bn_stats(k, c):
        k1, k2, k3, k4 = jax.random.split(k, 4)
        gamma = jax.random.uniform(k1, (c,), jnp.float32, minval=0.5, maxval=1.5)
        beta = 0.1 * jax.random.normal(k2, (c,), jnp.float32)
        mean = 0.1 * jax.random.normal(k3, (c,), jnp.float32)
        var = jax.random.uniform(k4, (c,), jnp.float32, minval=0.5, maxval=1.5)
        return (gamma, beta, mean, var)

    return {
        "w1": conv_w(keys[0], cmid, cin),
        "bn1": bn_stats(keys[1], cmid),
        "w2": conv_w(keys[2], cmid, cmid),
        "bn2": bn_stats(keys[3], cmid),
        "w_ds": conv_w(keys[4], cmid, cin),
        "bn_ds": bn_stats(keys[5], cmid),
    }


def block_forward_ref(x, params, stride=1):
    """Pure-JAX (XLA conv) reference of the PyTorch forward, inference-mode BN."""
    def conv(v, w, s, p):
        return jax.lax.conv_general_dilated(
            v, w, window_strides=(s, s, s), padding=[(p, p)] * 3,
            dimension_numbers=("NCDHW", "OIDHW", "NCDHW"))

    def bn(v, stats):
        g, b, m, var = stats
        sc = g / jnp.sqrt(var + BN_EPS)
        sh = b - m * sc
        return v * sc[None, :, None, None, None] + sh[None, :, None, None, None]

    y = jax.nn.relu(bn(conv(x, params["w1"], stride, 0), params["bn1"]))
    y = bn(conv(y, params["w2"], 1, 1), params["bn2"])
    idn = bn(conv(x, params["w_ds"], stride, 0), params["bn_ds"])
    return jax.nn.relu(y + idn)


if __name__ == "__main__":
    key = jax.random.PRNGKey(0)
    kx, kp = jax.random.split(key)

    N, CIN, CMID, D = 2, 4, 8, 8
    x = jax.random.normal(kx, (N, CIN, D, D, D), jnp.float32)   # NCDHW like PyTorch
    params = make_params(kp, CIN, CMID)

    out = block_forward(x, params, stride=1)
    out = jax.block_until_ready(out)
    assert out.shape == (N, CMID, D - 2, D - 2, D - 2), out.shape

    ref = block_forward_ref(x, params, stride=1)
    np.testing.assert_allclose(np.asarray(out), np.asarray(ref), rtol=3e-2, atol=3e-2)
    print("KERNEL_OK")
</pallas_src>

<mosaic_0001>
module attributes {stable_mosaic.version = 11 : i64} {
  func.func @_stage1_kernel(%arg0: i32, %arg1: memref<256x128xbf16, #tpu.memory_space<vmem>>, %arg2: memref<128x256xbf16, #tpu.memory_space<vmem>>, %arg3: memref<1x256xf32, #tpu.memory_space<vmem>>, %arg4: memref<256x128xf32, #tpu.memory_space<vmem>>, %arg5: memref<256x128xbf16, #tpu.memory_space<vmem>>) attributes {dimension_semantics = [#tpu.dimension_semantics<parallel>], iteration_bounds = array<i64: 2>, scalar_prefetch = 0 : i64, scratch_operands = 0 : i64, tpu.core_type = #tpu.core_type<tc>, window_params = [{transform_indices = @transform_0, window_bounds = array<i64: 256, 128>}, {pipeline_mode = #tpu.pipeline_mode<synchronous>, transform_indices = @transform_1, window_bounds = array<i64: 128, 256>}, {pipeline_mode = #tpu.pipeline_mode<synchronous>, transform_indices = @transform_2, window_bounds = array<i64: 1, 256>}, {transform_indices = @transform_3, window_bounds = array<i64: 256, 128>}, {transform_indices = @transform_4, window_bounds = array<i64: 256, 128>}]} {
    %c0 = arith.constant 0 : index
    %c0_0 = arith.constant 0 : index
    %0 = vector.load %arg1[%c0, %c0_0] : memref<256x128xbf16, #tpu.memory_space<vmem>>, vector<256x128xbf16>
    %c0_1 = arith.constant 0 : index
    %c0_2 = arith.constant 0 : index
    %1 = vector.load %arg2[%c0_1, %c0_2] : memref<128x256xbf16, #tpu.memory_space<vmem>>, vector<128x256xbf16>
    %cst = arith.constant dense<0.000000e+00> : vector<256x256xf32>
    %2 = tpu.matmul %0, %1, %cst {dimension_numbers = #tpu.dot_dimension_numbers<[1], [0], [0], [1], [0, 0, 1, 1], [], []>} : vector<256x128xbf16>, vector<128x256xbf16>, vector<256x256xf32> -> vector<256x256xf32>
    %c0_3 = arith.constant 0 : index
    %c0_4 = arith.constant 0 : index
    %3 = vector.load %arg3[%c0_3, %c0_4] : memref<1x256xf32, #tpu.memory_space<vmem>>, vector<1x256xf32>
    %4 = vector.broadcast %3 : vector<1x256xf32> to vector<256x256xf32>
    %5 = arith.addf %2, %4 : vector<256x256xf32>
    %6 = vector.extract_strided_slice %5 {offsets = [0, 0], sizes = [256, 128], strides = [1, 1]} : vector<256x256xf32> to vector<256x128xf32>
    %cst_5 = arith.constant 0.000000e+00 : f32
    %7 = vector.broadcast %cst_5 : f32 to vector<256x128xf32>
    %8 = arith.maximumf %6, %7 : vector<256x128xf32>
    %c0_6 = arith.constant 0 : index
    %c0_7 = arith.constant 0 : index
    %9 = vector.load %arg4[%c0_6, %c0_7] : memref<256x128xf32, #tpu.memory_space<vmem>>, vector<256x128xf32>
    tpu.vector_store %arg4[%c0_6, %c0_7], %8 {strides = array<i32>} : memref<256x128xf32, #tpu.memory_space<vmem>>, vector<256x128xf32>,
    %10 = vector.extract_strided_slice %5 {offsets = [0, 128], sizes = [256, 128], strides = [1, 1]} : vector<256x256xf32> to vector<256x128xf32>
    %11 = arith.truncf %10 : vector<256x128xf32> to vector<256x128xbf16>
    %c0_8 = arith.constant 0 : index
    %c0_9 = arith.constant 0 : index
    %12 = vector.load %arg5[%c0_8, %c0_9] : memref<256x128xbf16, #tpu.memory_space<vmem>>, vector<256x128xbf16>
    tpu.vector_store %arg5[%c0_8, %c0_9], %11 {strides = array<i32>} : memref<256x128xbf16, #tpu.memory_space<vmem>>, vector<256x128xbf16>,
    return
  }
  func.func @transform_0(%arg0: i32) -> (i32, i32) {
    %c0_i32 = arith.constant 0 : i32
    %c0_i32_0 = arith.constant 0 : i32
    return %arg0, %c0_i32 : i32, i32
  }
  func.func @transform_1(%arg0: i32) -> (i32, i32) {
    %c0_i32 = arith.constant 0 : i32
    %c0_i32_0 = arith.constant 0 : i32
    %c0_i32_1 = arith.constant 0 : i32
    return %c0_i32, %c0_i32_0 : i32, i32
  }
  func.func @transform_2(%arg0: i32) -> (i32, i32) {
    %c0_i32 = arith.constant 0 : i32
    %c0_i32_0 = arith.constant 0 : i32
    %c0_i32_1 = arith.constant 0 : i32
    return %c0_i32, %c0_i32_0 : i32, i32
  }
  func.func @transform_3(%arg0: i32) -> (i32, i32) {
    %c0_i32 = arith.constant 0 : i32
    %c0_i32_0 = arith.constant 0 : i32
    return %arg0, %c0_i32 : i32, i32
  }
  func.func @transform_4(%arg0: i32) -> (i32, i32) {
    %c0_i32 = arith.constant 0 : i32
    %c0_i32_0 = arith.constant 0 : i32
    return %arg0, %c0_i32 : i32, i32
  }
}

module attributes {stable_mosaic.version = 11 : i64} {
  func.func @kernel(%arg0: i32, %arg1: i32, %arg2: i32, %arg3: memref<1x1x72x8xf32, #tpu.memory_space<vmem>>, %arg4: memref<1x9x8x128xf32, #tpu.memory_space<vmem>>, %arg5: memref<1x128xf32, #tpu.memory_space<vmem>>, %arg6: memref<1x1x48x128xbf16, #tpu.memory_space<vmem>>, %arg7: memref<1x1x48x128xf32, #tpu.memory_space<vmem>>, %arg8: memref<48x128xf32, #tpu.memory_space<vmem>>) attributes {dimension_semantics = [#tpu.dimension_semantics<parallel>, #tpu.dimension_semantics<parallel>, #tpu.dimension_semantics<arbitrary>], iteration_bounds = array<i64: 2, 6, 3>, scalar_prefetch = 0 : i64, scratch_operands = 1 : i64, tpu.core_type = #tpu.core_type<tc>, window_params = [{transform_indices = @transform_0, window_bounds = array<i64: 1, 1, 72, 8>}, {transform_indices = @transform_1, window_bounds = array<i64: 1, 9, 8, 128>}, {pipeline_mode = #tpu.pipeline_mode<synchronous>, transform_indices = @transform_2, window_bounds = array<i64: 1, 128>}, {transform_indices = @transform_3, window_bounds = array<i64: 1, 1, 48, 128>}, {transform_indices = @transform_4, window_bounds = array<i64: 1, 1, 48, 128>}]} {
    %c0_i32 = arith.constant 0 : i32
    %0 = arith.cmpi eq, %arg2, %c0_i32 : i32
    %1 = arith.extui %0 : i1 to i32
    %c0_i32_0 = arith.constant 0 : i32
    %2 = arith.cmpi ne, %1, %c0_i32_0 : i32
    scf.if %2 {
      %cst_45 = arith.constant 0.000000e+00 : f32
      %55 = vector.broadcast %cst_45 : f32 to vector<48x128xf32>
      %c0_46 = arith.constant 0 : index
      %c0_47 = arith.constant 0 : index
      %56 = vector.load %arg8[%c0_46, %c0_47] : memref<48x128xf32, #tpu.memory_space<vmem>>, vector<48x128xf32>
      tpu.vector_store %arg8[%c0_46, %c0_47], %55 {strides = array<i32>} : memref<48x128xf32, #tpu.memory_space<vmem>>, vector<48x128xf32>,
    } else {
    }
    %c0 = arith.constant 0 : index
    %c0_1 = arith.constant 0 : index
    %c0_2 = arith.constant 0 : index
    %c0_3 = arith.constant 0 : index
    %3 = vector.load %arg3[%c0, %c0_1, %c0_2, %c0_3] : memref<1x1x72x8xf32, #tpu.memory_space<vmem>>, vector<1x1x72x8xf32>
    %4 = vector.shape_cast %3 : vector<1x1x72x8xf32> to vector<72x8xf32>
    %c0_4 = arith.constant 0 : index
    %c0_5 = arith.constant 0 : index
    %5 = vector.load %arg8[%c0_4, %c0_5] : memref<48x128xf32, #tpu.memory_space<vmem>>, vector<48x128xf32>
    %6 = vector.extract_strided_slice %4 {offsets = [0, 0], sizes = [48, 8], strides = [1, 1]} : vector<72x8xf32> to vector<48x8xf32>
    %c0_6 = arith.constant 0 : index
    %c0_7 = arith.constant 0 : index
    %c0_8 = arith.constant 0 : index
    %c0_9 = arith.constant 0 : index
    %7 = vector.load %arg4[%c0_6, %c0_7, %c0_8, %c0_9] : memref<1x9x8x128xf32, #tpu.memory_space<vmem>>, vector<1x1x8x128xf32>
    %8 = vector.shape_cast %7 : vector<1x1x8x128xf32> to vector<8x128xf32>
    %cst = arith.constant dense<0.000000e+00> : vector<48x128xf32>
    %9 = tpu.matmul %6, %8, %cst {dimension_numbers = #tpu.dot_dimension_numbers<[1], [0], [0], [1], [0, 0, 1, 1], [], []>} : vector<48x8xf32>, vector<8x128xf32>, vector<48x128xf32> -> vector<48x128xf32>
    %10 = arith.addf %5, %9 : vector<48x128xf32>
    %11 = vector.extract_strided_slice %4 {offsets = [1, 0], sizes = [48, 8], strides = [1, 1]} : vector<72x8xf32> to vector<48x8xf32>
    %c0_10 = arith.constant 0 : index
    %c1 = arith.constant 1 : index
    %c0_11 = arith.constant 0 : index
    %c0_12 = arith.constant 0 : index
    %12 = vector.load %arg4[%c0_10, %c1, %c0_11, %c0_12] : memref<1x9x8x128xf32, #tpu.memory_space<vmem>>, vector<1x1x8x128xf32>
    %13 = vector.shape_cast %12 : vector<1x1x8x128xf32> to vector<8x128xf32>
    %cst_13 = arith.constant dense<0.000000e+00> : vector<48x128xf32>
    %14 = tpu.matmul %11, %13, %cst_13 {dimension_numbers = #tpu.dot_dimension_numbers<[1], [0], [0], [1], [0, 0, 1, 1], [], []>} : vector<48x8xf32>, vector<8x128xf32>, vector<48x128xf32> -> vector<48x128xf32>
    %15 = arith.addf %10, %14 : vector<48x128xf32>
    %16 = vector.extract_strided_slice %4 {offsets = [2, 0], sizes = [48, 8], strides = [1, 1]} : vector<72x8xf32> to vector<48x8xf32>
    %c0_14 = arith.constant 0 : index
    %c2 = arith.constant 2 : index
    %c0_15 = arith.constant 0 : index
    %c0_16 = arith.constant 0 : index
    %17 = vector.load %arg4[%c0_14, %c2, %c0_15, %c0_16] : memref<1x9x8x128xf32, #tpu.memory_space<vmem>>, vector<1x1x8x128xf32>
    %18 = vector.shape_cast %17 : vector<1x1x8x128xf32> to vector<8x128xf32>
    %cst_17 = arith.constant dense<0.000000e+00> : vector<48x128xf32>
    %19 = tpu.matmul %16, %18, %cst_17 {dimension_numbers = #tpu.dot_dimension_numbers<[1], [0], [0], [1], [0, 0, 1, 1], [], []>} : vector<48x8xf32>, vector<8x128xf32>, vector<48x128xf32> -> vector<48x128xf32>
    %20 = arith.addf %15, %19 : vector<48x128xf32>
    %21 = vector.extract_strided_slice %4 {offsets = [8, 0], sizes = [48, 8], strides = [1, 1]} : vector<72x8xf32> to vector<48x8xf32>
    %c0_18 = arith.constant 0 : index
    %c3 = arith.constant 3 : index
    %c0_19 = arith.constant 0 : index
    %c0_20 = arith.constant 0 : index
    %22 = vector.load %arg4[%c0_18, %c3, %c0_19, %c0_20] : memref<1x9x8x128xf32, #tpu.memory_space<vmem>>, vector<1x1x8x128xf32>
    %23 = vector.shape_cast %22 : vector<1x1x8x128xf32> to vector<8x128xf32>
    %cst_21 = arith.constant dense<0.000000e+00> : vector<48x128xf32>
    %24 = tpu.matmul %21, %23, %cst_21 {dimension_numbers = #tpu.dot_dimension_numbers<[1], [0], [0], [1], [0, 0, 1, 1], [], []>} : vector<48x8xf32>, vector<8x128xf32>, vector<48x128xf32> -> vector<48x128xf32>
    %25 = arith.addf %20, %24 : vector<48x128xf32>
    %26 = vector.extract_strided_slice %4 {offsets = [9, 0], sizes = [48, 8], strides = [1, 1]} : vector<72x8xf32> to vector<48x8xf32>
    %c0_22 = arith.constant 0 : index
    %c4 = arith.constant 4 : index
    %c0_23 = arith.constant 0 : index
    %c0_24 = arith.constant 0 : index
    %27 = vector.load %arg4[%c0_22, %c4, %c0_23, %c0_24] : memref<1x9x8x128xf32, #tpu.memory_space<vmem>>, vector<1x1x8x128xf32>
    %28 = vector.shape_cast %27 : vector<1x1x8x128xf32> to vector<8x128xf32>
    %cst_25 = arith.constant dense<0.000000e+00> : vector<48x128xf32>
    %29 = tpu.matmul %26, %28, %cst_25 {dimension_numbers = #tpu.dot_dimension_numbers<[1], [0], [0], [1], [0, 0, 1, 1], [], []>} : vector<48x8xf32>, vector<8x128xf32>, vector<48x128xf32> -> vector<48x128xf32>
    %30 = arith.addf %25, %29 : vector<48x128xf32>
    %31 = vector.extract_strided_slice %4 {offsets = [10, 0], sizes = [48, 8], strides = [1, 1]} : vector<72x8xf32> to vector<48x8xf32>
    %c0_26 = arith.constant 0 : index
    %c5 = arith.constant 5 : index
    %c0_27 = arith.constant 0 : index
    %c0_28 = arith.constant 0 : index
    %32 = vector.load %arg4[%c0_26, %c5, %c0_27, %c0_28] : memref<1x9x8x128xf32, #tpu.memory_space<vmem>>, vector<1x1x8x128xf32>
    %33 = vector.shape_cast %32 : vector<1x1x8x128xf32> to vector<8x128xf32>
    %cst_29 = arith.constant dense<0.000000e+00> : vector<48x128xf32>
    %34 = tpu.matmul %31, %33, %cst_29 {dimension_numbers = #tpu.dot_dimension_numbers<[1], [0], [0], [1], [0, 0, 1, 1], [], []>} : vector<48x8xf32>, vector<8x128xf32>, vector<48x128xf32> -> vector<48x128xf32>
    %35 = arith.addf %30, %34 : vector<48x128xf32>
    %36 = vector.extract_strided_slice %4 {offsets = [16, 0], sizes = [48, 8], strides = [1, 1]} : vector<72x8xf32> to vector<48x8xf32>
    %c0_30 = arith.constant 0 : index
    %c6 = arith.constant 6 : index
    %c0_31 = arith.constant 0 : index
    %c0_32 = arith.constant 0 : index
    %37 = vector.load %arg4[%c0_30, %c6, %c0_31, %c0_32] : memref<1x9x8x128xf32, #tpu.memory_space<vmem>>, vector<1x1x8x128xf32>
    %38 = vector.shape_cast %37 : vector<1x1x8x128xf32> to vector<8x128xf32>
    %cst_33 = arith.constant dense<0.000000e+00> : vector<48x128xf32>
    %39 = tpu.matmul %36, %38, %cst_33 {dimension_numbers = #tpu.dot_dimension_numbers<[1], [0], [0], [1], [0, 0, 1, 1], [], []>} : vector<48x8xf32>, vector<8x128xf32>, vector<48x128xf32> -> vector<48x128xf32>
    %40 = arith.addf %35, %39 : vector<48x128xf32>
    %41 = vector.extract_strided_slice %4 {offsets = [17, 0], sizes = [48, 8], strides = [1, 1]} : vector<72x8xf32> to vector<48x8xf32>
    %c0_34 = arith.constant 0 : index
    %c7 = arith.constant 7 : index
    %c0_35 = arith.constant 0 : index
    %c0_36 = arith.constant 0 : index
    %42 = vector.load %arg4[%c0_34, %c7, %c0_35, %c0_36] : memref<1x9x8x128xf32, #tpu.memory_space<vmem>>, vector<1x1x8x128xf32>
    %43 = vector.shape_cast %42 : vector<1x1x8x128xf32> to vector<8x128xf32>
    %cst_37 = arith.constant dense<0.000000e+00> : vector<48x128xf32>
    %44 = tpu.matmul %41, %43, %cst_37 {dimension_numbers = #tpu.dot_dimension_numbers<[1], [0], [0], [1], [0, 0, 1, 1], [], []>} : vector<48x8xf32>, vector<8x128xf32>, vector<48x128xf32> -> vector<48x128xf32>
    %45 = arith.addf %40, %44 : vector<48x128xf32>
    %46 = vector.extract_strided_slice %4 {offsets = [18, 0], sizes = [48, 8], strides = [1, 1]} : vector<72x8xf32> to vector<48x8xf32>
    %c0_38 = arith.constant 0 : index
    %c8 = arith.constant 8 : index
    %c0_39 = arith.constant 0 : index
    %c0_40 = arith.constant 0 : index
    %47 = vector.load %arg4[%c0_38, %c8, %c0_39, %c0_40] : memref<1x9x8x128xf32, #tpu.memory_space<vmem>>, vector<1x1x8x128xf32>
    %48 = vector.shape_cast %47 : vector<1x1x8x128xf32> to vector<8x128xf32>
    %cst_41 = arith.constant dense<0.000000e+00> : vector<48x128xf32>
    %49 = tpu.matmul %46, %48, %cst_41 {dimension_numbers = #tpu.dot_dimension_numbers<[1], [0], [0], [1], [0, 0, 1, 1], [], []>} : vector<48x8xf32>, vector<8x128xf32>, vector<48x128xf32> -> vector<48x128xf32>
    %50 = arith.addf %45, %49 : vector<48x128xf32>
    %c0_42 = arith.constant 0 : index
    %c0_43 = arith.constant 0 : index
    %51 = vector.load %arg8[%c0_42, %c0_43] : memref<48x128xf32, #tpu.memory_space<vmem>>, vector<48x128xf32>
    tpu.vector_store %arg8[%c0_42, %c0_43], %50 {strides = array<i32>} : memref<48x128xf32, #tpu.memory_space<vmem>>, vector<48x128xf32>,
    %c2_i32 = arith.constant 2 : i32
    %52 = arith.cmpi eq, %arg2, %c2_i32 : i32
    %53 = arith.extui %52 : i1 to i32
    %c0_i32_44 = arith.constant 0 : i32
    %54 = arith.cmpi ne, %53, %c0_i32_44 : i32
    scf.if %54 {
      %c0_45 = arith.constant 0 : index
      %c0_46 = arith.constant 0 : index
      %55 = vector.load %arg8[%c0_45, %c0_46] : memref<48x128xf32, #tpu.memory_space<vmem>>, vector<48x128xf32>
      %c0_47 = arith.constant 0 : index
      %c0_48 = arith.constant 0 : index
      %56 = vector.load %arg5[%c0_47, %c0_48] : memref<1x128xf32, #tpu.memory_space<vmem>>, vector<1x128xf32>
      %57 = vector.broadcast %56 : vector<1x128xf32> to vector<48x128xf32>
      %58 = arith.addf %55, %57 : vector<48x128xf32>
      %c0_49 = arith.constant 0 : index
      %c0_50 = arith.constant 0 : index
      %c0_51 = arith.constant 0 : index
      %c0_52 = arith.constant 0 : index
      %59 = vector.load %arg6[%c0_49, %c0_50, %c0_51, %c0_52] : memref<1x1x48x128xbf16, #tpu.memory_space<vmem>>, vector<1x1x48x128xbf16>
      %60 = vector.shape_cast %59 : vector<1x1x48x128xbf16> to vector<48x128xbf16>
      %61 = arith.extf %60 : vector<48x128xbf16> to vector<48x128xf32>
      %62 = arith.addf %58, %61 : vector<48x128xf32>
      %cst_53 = arith.constant 0.000000e+00 : f32
      %63 = vector.broadcast %cst_53 : f32 to vector<48x128xf32>
      %64 = arith.maximumf %62, %63 : vector<48x128xf32>
      %c0_54 = arith.constant 0 : index
      %c0_55 = arith.constant 0 : index
      %c0_56 = arith.constant 0 : index
      %c0_57 = arith.constant 0 : index
      %65 = vector.load %arg7[%c0_54, %c0_55, %c0_56, %c0_57] : memref<1x1x48x128xf32, #tpu.memory_space<vmem>>, vector<1x1x48x128xf32>
      %66 = vector.shape_cast %65 : vector<1x1x48x128xf32> to vector<48x128xf32>
      %67 = vector.shape_cast %64 : vector<48x128xf32> to vector<1x1x48x128xf32>
      tpu.vector_store %arg7[%c0_54, %c0_55, %c0_56, %c0_57], %67 {strides = array<i32>} : memref<1x1x48x128xf32, #tpu.memory_space<vmem>>, vector<1x1x48x128xf32>,
    } else {
    }
    return
  }
  func.func @transform_0(%arg0: i32, %arg1: i32, %arg2: i32) -> (i32, i32, i32, i32) {
    %0 = arith.addi %arg1, %arg2 : i32
    %c0_i32 = arith.constant 0 : i32
    %c0_i32_0 = arith.constant 0 : i32
    %c0_i32_1 = arith.constant 0 : i32
    return %arg0, %0, %c0_i32, %c0_i32_0 : i32, i32, i32, i32
  }
  func.func @transform_1(%arg0: i32, %arg1: i32, %arg2: i32) -> (i32, i32, i32, i32) {
    %c0_i32 = arith.constant 0 : i32
    %c0_i32_0 = arith.constant 0 : i32
    %c0_i32_1 = arith.constant 0 : i32
    %c0_i32_2 = arith.constant 0 : i32
    return %arg2, %c0_i32, %c0_i32_0, %c0_i32_1 : i32, i32, i32, i32
  }
  func.func @transform_2(%arg0: i32, %arg1: i32, %arg2: i32) -> (i32, i32) {
    %c0_i32 = arith.constant 0 : i32
    %c0_i32_0 = arith.constant 0 : i32
    %c0_i32_1 = arith.constant 0 : i32
    return %c0_i32, %c0_i32_0 : i32, i32
  }
  func.func @transform_3(%arg0: i32, %arg1: i32, %arg2: i32) -> (i32, i32, i32, i32) {
    %c0_i32 = arith.constant 0 : i32
    %c0_i32_0 = arith.constant 0 : i32
    %c0_i32_1 = arith.constant 0 : i32
    return %arg0, %arg1, %c0_i32, %c0_i32_0 : i32, i32, i32, i32
  }
  func.func @transform_4(%arg0: i32, %arg1: i32, %arg2: i32) -> (i32, i32, i32, i32) {
    %c0_i32 = arith.constant 0 : i32
    %c0_i32_0 = arith.constant 0 : i32
    %c0_i32_1 = arith.constant 0 : i32
    return %arg0, %arg1, %c0_i32, %c0_i32_0 : i32, i32, i32, i32
  }
}

</mosaic_0001>

<llo_original>
// kernel: block_forward.2
$region0: #{block_forward.2}
  #allocation0 [shape = 'u32[]', space=smem, size = 0x4, offset = 0x4, fixed_abs, tag = 'smem constant byte address 0x4 - core index']
  #allocation1 [shape = 'u32[72,128]{1,0:T(1,128)}', space=vmem, size = 0x9000, scoped, tag = 'internal scratch']
  %s0 = inlined_call_operand.vmem [shape: bf16[512,128], index: 0, kind: input, shape index: {}]
  %s1 = inlined_call_operand.vmem [shape: bf16[128,256], index: 1, kind: input, shape index: {}]
  %s2 = inlined_call_operand.vmem [shape: f32[1,256], index: 2, kind: input, shape index: {}]
  %s3 = inlined_call_operand.vmem [shape: f32[512,128], index: 3, kind: output, shape index: {0}]
  %s4 = inlined_call_operand.vmem [shape: bf16[512,128], index: 4, kind: output, shape index: {1}]
  %5 = xla_tuple %s3, %s4
  %s6 = sld [smem:[#allocation0]]
  $region53: #{block_forward.2} parent=0
    _
  %s8 = ssub.s32 1, %s6
  %s9 = scalar_select 0, %s8, %s6
  loop: start=0, step=1, limit=4
  $region2: #{block_forward.2} parent=0 // loop_pre_header
    _
  $region3: #{block_forward.2} parent=0 // loop_header
    %s11 = sphi 0, %s15
    %p12 = scmp.ge.s32.totalorder %s11, 4
    %s21 = sphi 0, %s23
    %s24 = sphi 0, %s21
    %s25 = sphi 0, %s24
    %s41 = sphi 0, %s25
    %s45 = sphi 0, %s45
    %s47 = sphi 0, %s45
    %s48 = sphi 0, %s47
    %s62 = sphi 0, %s48
    %s66 = sphi 0, %s66
    %s68 = sphi 0, %s66
    %s69 = sphi 0, %s68
    %s83 = sphi 0, %s69
    %s89 = sphi 0, %s91
    %s92 = sphi 0, %s89
    %s93 = sphi 0, %s92
    %s109 = sphi 0, %s93
    %s115 = sphi 0, %s117
    %s118 = sphi 0, %s115
    %s119 = sphi 0, %s118
    %s135 = sphi 0, %s119
  $region4: #{block_forward.2} parent=0 // loop_header_branch
    %14 = sbr.rel (%p12) target = $region8
  $region5: #{block_forward.2} parent=0 // loop_body
    %s16 = ssub.s32 %s11, 1
    %s17 = ssub.s32 %s11, 2
    %s18 = sadd.s32 %s11, 1
    %s19 = ssub.s32 %s11, %s18
    %p20 = scmp.eq.s32.totalorder %s19, 0
    %s22 = sadd.s32 %s21, 1
    %s23 = scalar_select %p20, %s21, %s22
    %p26 = pneg %p20
    %p27 = scmp.eq.s32.totalorder %s11, 1
    %p28 = por %p26, %p27
    %p29 = scmp.ne.s32.totalorder %s21, %s24
    %p30 = scmp.eq.s32.totalorder %s11, 0
    %p31 = por %p29, %p30
    %p32 = scmp.ne.s32.totalorder %s21, %s24
    %p33 = scmp.eq.s32.totalorder %s16, 1
    %p34 = por %p32, %p33
    %p35 = scmp.ne.s32.totalorder %s24, %s25
    %p36 = scmp.eq.s32.totalorder %s16, 0
    %p37 = por %p35, %p36
    %p38 = scmp.ne.s32.totalorder %s24, %s25
    %p39 = scmp.eq.s32.totalorder %s17, 1
    %p40 = por %p38, %p39
    %p42 = scmp.ne.s32.totalorder %s25, %s41
    %p43 = scmp.eq.s32.totalorder %s17, 0
    %p44 = por %p42, %p43
    %s46 = sadd.s32 %s45, 1
    %p49 = scmp.eq.s32.totalorder %s11, 1
    %p50 = scmp.ne.s32.totalorder %s45, %s47
    %p51 = scmp.eq.s32.totalorder %s11, 0
    %p52 = por %p50, %p51
    %p53 = scmp.ne.s32.totalorder %s45, %s47
    %p54 = scmp.eq.s32.totalorder %s16, 1
    %p55 = por %p53, %p54
    %p56 = scmp.ne.s32.totalorder %s47, %s48
    %p57 = scmp.eq.s32.totalorder %s16, 0
    %p58 = por %p56, %p57
    %p59 = scmp.ne.s32.totalorder %s47, %s48
    %p60 = scmp.eq.s32.totalorder %s17, 1
    %p61 = por %p59, %p60
    %p63 = scmp.ne.s32.totalorder %s48, %s62
    %p64 = scmp.eq.s32.totalorder %s17, 0
    %p65 = por %p63, %p64
    %s67 = sadd.s32 %s66, 1
    %p70 = scmp.eq.s32.totalorder %s11, 1
    %p71 = scmp.ne.s32.totalorder %s66, %s68
    %p72 = scmp.eq.s32.totalorder %s11, 0
    %p73 = por %p71, %p72
    %p74 = scmp.ne.s32.totalorder %s66, %s68
    %p75 = scmp.eq.s32.totalorder %s16, 1
    %p76 = por %p74, %p75
    %p77 = scmp.ne.s32.totalorder %s68, %s69
    %p78 = scmp.eq.s32.totalorder %s16, 0
    %p79 = por %p77, %p78
    %p80 = scmp.ne.s32.totalorder %s68, %s69
    %p81 = scmp.eq.s32.totalorder %s17, 1
    %p82 = por %p80, %p81
    %p84 = scmp.ne.s32.totalorder %s69, %s83
    %p85 = scmp.eq.s32.totalorder %s17, 0
    %p86 = por %p84, %p85
    %s87 = ssub.s32 %s11, %s18
    %p88 = scmp.eq.s32.totalorder %s87, 0
    %s90 = sadd.s32 %s89, 1
    %s91 = scalar_select %p88, %s89, %s90
    %p94 = pneg %p88
    %p95 = scmp.eq.s32.totalorder %s11, 1
    %p96 = por %p94, %p95
    %p97 = scmp.ne.s32.totalorder %s89, %s92
    %p98 = scmp.eq.s32.totalorder %s11, 0
    %p99 = por %p97, %p98
    %p100 = scmp.ne.s32.totalorder %s89, %s92
    %p101 = scmp.eq.s32.totalorder %s16, 1
    %p102 = por %p100, %p101
    %p103 = scmp.ne.s32.totalorder %s92, %s93
    %p104 = scmp.eq.s32.totalorder %s16, 0
    %p105 = por %p103, %p104
    %p106 = scmp.ne.s32.totalorder %s92, %s93
    %p107 = scmp.eq.s32.totalorder %s17, 1
    %p108 = por %p106, %p107
    %p110 = scmp.ne.s32.totalorder %s93, %s109
    %p111 = scmp.eq.s32.totalorder %s17, 0
    %p112 = por %p110, %p111
    %s113 = ssub.s32 %s11, %s18
    %p114 = scmp.eq.s32.totalorder %s113, 0
    %s116 = sadd.s32 %s115, 1
    %s117 = scalar_select %p114, %s115, %s116
    %p120 = pneg %p114
    %p121 = scmp.eq.s32.totalorder %s11, 1
    %p122 = por %p120, %p121
    %p123 = scmp.ne.s32.totalorder %s115, %s118
    %p124 = scmp.eq.s32.totalorder %s11, 0
    %p125 = por %p123, %p124
    %p126 = scmp.ne.s32.totalorder %s115, %s118
    %p127 = scmp.eq.s32.totalorder %s16, 1
    %p128 = por %p126, %p127
    %p129 = scmp.ne.s32.totalorder %s118, %s119
    %p130 = scmp.eq.s32.totalorder %s16, 0
    %p131 = por %p129, %p130
    %p132 = scmp.ne.s32.totalorder %s118, %s119
    %p133 = scmp.eq.s32.totalorder %s17, 1
    %p134 = por %p132, %p133
    %p136 = scmp.ne.s32.totalorder %s119, %s135
    %p137 = scmp.eq.s32.totalorder %s17, 0
    %p138 = por %p136, %p137
    %p139 = scmp.le.s32.totalorder 1, %s11
    %p140 = scmp.lt.s32.totalorder %s11, 3
    %p141 = pnand %p139, %p140
    %p142 = pneg %p141
    // Predicated region
    $region9: #{block_forward.2} parent=5 // pred_check
      _
    $region10: #{block_forward.2} parent=5 // pred_check_branch
      %144 = sbr.rel (%p141) target = $region12
    $region11: #{block_forward.2} parent=5 // pred_region
      %s145 = ssub.s32 %s11, 1
      // Predicated region
      $region13: #{block_forward.2} parent=11 // pred_check
        %p146 = pneg %p58
      $region14: #{block_forward.2} parent=11 // pred_check_branch
        %148 = sbr.rel (%p146) target = $region16
      $region15: #{block_forward.2} parent=11 // pred_region
        _
      $region16: #{block_forward.2} parent=11 // pred_fallthru
        _
      // Predicated region
      $region17: #{block_forward.2} parent=11 // pred_check
        %p149 = pneg %p79
      $region18: #{block_forward.2} parent=11 // pred_check_branch
        %151 = sbr.rel (%p149) target = $region20
      $region19: #{block_forward.2} parent=11 // pred_region
        _
      $region20: #{block_forward.2} parent=11 // pred_fallthru
        _
    $region12: #{block_forward.2} parent=5 // pred_fallthru
      _
    %p152 = scmp.lt.s32.totalorder %s11, 2
    // Predicated region
    $region21: #{block_forward.2} parent=5 // pred_check
      %p153 = pneg %p152
    $region22: #{block_forward.2} parent=5 // pred_check_branch
      %155 = sbr.rel (%p153) target = $region24
    $region23: #{block_forward.2} parent=5 // pred_region
      // Predicated region
      $region25: #{block_forward.2} parent=23 // pred_check
        %p156 = pneg %p31
      $region26: #{block_forward.2} parent=23 // pred_check_branch
        %158 = sbr.rel (%p156) target = $region28
      $region27: #{block_forward.2} parent=23 // pred_region
        %s159 = smul.u32 32, %s11
        %p160 = scmp.lt.s32.totalorder %s159, 63
        %s161 = scalar_select %p160, %s159, 63
        %s162 = smul.addr %s161, 4
        %s163 = scalar_lea.vmem %s0, %s162
        %s164 = smul.u32 32, %s11
      $region28: #{block_forward.2} parent=23 // pred_fallthru
        _
    $region24: #{block_forward.2} parent=5 // pred_fallthru
      _
    %p165 = scmp.le.s32.totalorder 1, %s11
    %p166 = scmp.lt.s32.totalorder %s11, 3
    %p167 = pnand %p165, %p166
    %p168 = pneg %p167
    // Predicated region
    $region29: #{block_forward.2} parent=5 // pred_check
      _
    $region30: #{block_forward.2} parent=5 // pred_check_branch
      %170 = sbr.rel (%p167) target = $region32
    $region31: #{block_forward.2} parent=5 // pred_region
      %s171 = ssub.s32 %s11, 1
      %s172 = smul.u32 32, %s16
      %p173 = scmp.lt.s32.totalorder %s172, 63
      %s174 = scalar_select %p173, %s172, 63
      %s175 = smul.addr %s174, 4
      %s176 = scalar_lea.vmem %s0, %s175
      %p177 = pneg %p37
      %p178 = pneg %p34
      %p179 = pneg %p58
      %p180 = pneg %p55
      %p181 = pneg %p79
      %p182 = pneg %p76
      %p183 = pneg %p105
      %p184 = pneg %p102
      %s185 = smul.u32 32, %s16
      %p186 = scmp.lt.s32.totalorder %s185, 63
      %s187 = scalar_select %p186, %s185, 63
      %s188 = smul.addr %s187, 8
      %s189 = scalar_lea.vmem %s3, %s188
      %p190 = pneg %p131
      %p191 = pneg %p128
      %s192 = smul.u32 32, %s16
      %p193 = scmp.lt.s32.totalorder %s192, 63
      %s194 = scalar_select %p193, %s192, 63
      %s195 = smul.addr %s194, 4
      %s196 = scalar_lea.vmem %s4, %s195
      %s197 = smul.u32 32, %s16
      %p198 = scmp.lt.s32.totalorder %s197, 63
      %s199 = scalar_select %p198, %s197, 63
      %s200 = smul.addr %s199, 4
      %s201 = scalar_lea.vmem %s0, %s200
      %s202 = smul.u32 32, %s16
      %s203 = smul.u32 32, %s16
      %p204 = scmp.lt.s32.totalorder %s203, 63
      %s205 = scalar_select %p204, %s203, 63
      %s206 = smul.addr %s205, 8
      %s207 = scalar_lea.vmem %s3, %s206
      %s208 = smul.u32 32, %s16
      %s209 = smul.u32 32, %s16
      %p210 = scmp.lt.s32.totalorder %s209, 63
      %s211 = scalar_select %p210, %s209, 63
      %s212 = smul.addr %s211, 4
      %s213 = scalar_lea.vmem %s4, %s212
      %s214 = smul.u32 32, %s16
      %v215 = vld [vmem:[%s201] sm:$0xf]
      %v216 = vld [vmem:[%s201 + $0x4] sm:$0xf]
      %v217 = vld [vmem:[%s201 + $0x8] sm:$0xf]
      %v218 = vld [vmem:[%s201 + $0xc] sm:$0xf]
      %v219 = vld [vmem:[%s201 + $0x10] sm:$0xf]
      %v220 = vld [vmem:[%s201 + $0x14] sm:$0xf]
      %v221 = vld [vmem:[%s201 + $0x18] sm:$0xf]
      %v222 = vld [vmem:[%s201 + $0x1c] sm:$0xf]
      %v223 = vld [vmem:[%s201 + $0x20] sm:$0xf]
      %v224 = vld [vmem:[%s201 + $0x24] sm:$0xf]
      %v225 = vld [vmem:[%s201 + $0x28] sm:$0xf]
      %v226 = vld [vmem:[%s201 + $0x2c] sm:$0xf]
      %v227 = vld [vmem:[%s201 + $0x30] sm:$0xf]
      %v228 = vld [vmem:[%s201 + $0x34] sm:$0xf]
      %v229 = vld [vmem:[%s201 + $0x38] sm:$0xf]
      %v230 = vld [vmem:[%s201 + $0x3c] sm:$0xf]
      %v231 = vld [vmem:[%s201 + $0x40] sm:$0xf]
      %v232 = vld [vmem:[%s201 + $0x44] sm:$0xf]
      %v233 = vld [vmem:[%s201 + $0x48] sm:$0xf]
      %v234 = vld [vmem:[%s201 + $0x4c] sm:$0xf]
      %v235 = vld [vmem:[%s201 + $0x50] sm:$0xf]
      %v236 = vld [vmem:[%s201 + $0x54] sm:$0xf]
      %v237 = vld [vmem:[%s201 + $0x58] sm:$0xf]
      %v238 = vld [vmem:[%s201 + $0x5c] sm:$0xf]
      %v239 = vld [vmem:[%s201 + $0x60] sm:$0xf]
      %v240 = vld [vmem:[%s201 + $0x64] sm:$0xf]
      %v241 = vld [vmem:[%s201 + $0x68] sm:$0xf]
      %v242 = vld [vmem:[%s201 + $0x6c] sm:$0xf]
      %v243 = vld [vmem:[%s201 + $0x70] sm:$0xf]
      %v244 = vld [vmem:[%s201 + $0x74] sm:$0xf]
      %v245 = vld [vmem:[%s201 + $0x78] sm:$0xf]
      %v246 = vld [vmem:[%s201 + $0x7c] sm:$0xf]
      %v247 = vld [vmem:[%s1] sm:$0xff]
      %v248 = vld [vmem:[%s1 + $0x8] sm:$0xff]
      %v249 = vld [vmem:[%s1 + $0x10] sm:$0xff]
      %v250 = vld [vmem:[%s1 + $0x18] sm:$0xff]
      %v251 = vld [vmem:[%s1 + $0x20] sm:$0xff]
      %v252 = vld [vmem:[%s1 + $0x28] sm:$0xff]
      %v253 = vld [vmem:[%s1 + $0x30] sm:$0xff]
      %v254 = vld [vmem:[%s1 + $0x38] sm:$0xff]
      %v255 = vld [vmem:[%s1 + $0x40] sm:$0xff]
      %v256 = vld [vmem:[%s1 + $0x48] sm:$0xff]
      %v257 = vld [vmem:[%s1 + $0x50] sm:$0xff]
      %v258 = vld [vmem:[%s1 + $0x58] sm:$0xff]
      %v259 = vld [vmem:[%s1 + $0x60] sm:$0xff]
      %v260 = vld [vmem:[%s1 + $0x68] sm:$0xff]
      %v261 = vld [vmem:[%s1 + $0x70] sm:$0xff]
      %v262 = vld [vmem:[%s1 + $0x78] sm:$0xff]
      %v263 = vld [vmem:[%s2] sm:$0x3]
      %v265 = vperm.slane %v263, 0
      %v266 = vperm.slane %v263, 1
      %v301 = vunpack.c.l.b16 %v215
      %v302 = vunpack.c.l.b16 %v216
      %v303 = vunpack.c.l.b16 %v217
      %v304 = vunpack.c.l.b16 %v218
      %v305 = vunpack.c.l.b16 %v219
      %v306 = vunpack.c.l.b16 %v220
      %v307 = vunpack.c.l.b16 %v221
      %v308 = vunpack.c.l.b16 %v222
      %v309 = vunpack.c.l.b16 %v223
      %v310 = vunpack.c.l.b16 %v224
      %v311 = vunpack.c.l.b16 %v225
      %v312 = vunpack.c.l.b16 %v226
      %v313 = vunpack.c.l.b16 %v227
      %v314 = vunpack.c.l.b16 %v228
      %v315 = vunpack.c.l.b16 %v229
      %v316 = vunpack.c.l.b16 %v230
      %v317 = vunpack.c.l.b16 %v231
      %v318 = vunpack.c.l.b16 %v232
      %v319 = vunpack.c.l.b16 %v233
      %v320 = vunpack.c.l.b16 %v234
      %v321 = vunpack.c.l.b16 %v235
      %v322 = vunpack.c.l.b16 %v236
      %v323 = vunpack.c.l.b16 %v237
      %v324 = vunpack.c.l.b16 %v238
      %v325 = vunpack.c.l.b16 %v239
      %v326 = vunpack.c.l.b16 %v240
      %v327 = vunpack.c.l.b16 %v241
      %v328 = vunpack.c.l.b16 %v242
      %v329 = vunpack.c.l.b16 %v243
      %v330 = vunpack.c.l.b16 %v244
      %v331 = vunpack.c.l.b16 %v245
      %v332 = vunpack.c.l.b16 %v246
      %v333 = vpack.c.b16 %v302, %v301
      %v334 = vpack.c.b16 %v304, %v303
      %v335 = vpack.c.b16 %v306, %v305
      %v336 = vpack.c.b16 %v308, %v307
      %v337 = vpack.c.b16 %v310, %v309
      %v338 = vpack.c.b16 %v312, %v311
      %v339 = vpack.c.b16 %v314, %v313
      %v340 = vpack.c.b16 %v316, %v315
      %v341 = vpack.c.b16 %v318, %v317
      %v342 = vpack.c.b16 %v320, %v319
      %v343 = vpack.c.b16 %v322, %v321
      %v344 = vpack.c.b16 %v324, %v323
      %v345 = vpack.c.b16 %v326, %v325
      %v346 = vpack.c.b16 %v328, %v327
      %v347 = vpack.c.b16 %v330, %v329
      %v348 = vpack.c.b16 %v332, %v331
      %v381 = vunpack.c.l.b16 %v247
      %v382 = vunpack.c.h.b16 %v247
      %v383 = vunpack.c.l.b16 %v248
      %v384 = vunpack.c.h.b16 %v248
      %v385 = vunpack.c.l.b16 %v249
      %v386 = vunpack.c.h.b16 %v249
      %v387 = vunpack.c.l.b16 %v250
      %v388 = vunpack.c.h.b16 %v250
      %v389 = vunpack.c.l.b16 %v251
      %v390 = vunpack.c.h.b16 %v251
      %v391 = vunpack.c.l.b16 %v252
      %v392 = vunpack.c.h.b16 %v252
      %v393 = vunpack.c.l.b16 %v253
      %v394 = vunpack.c.h.b16 %v253
      %v395 = vunpack.c.l.b16 %v254
      %v396 = vunpack.c.h.b16 %v254
      %v397 = vunpack.c.l.b16 %v255
      %v398 = vunpack.c.h.b16 %v255
      %v399 = vunpack.c.l.b16 %v256
      %v400 = vunpack.c.h.b16 %v256
      %v401 = vunpack.c.l.b16 %v257
      %v402 = vunpack.c.h.b16 %v257
      %v403 = vunpack.c.l.b16 %v258
      %v404 = vunpack.c.h.b16 %v258
      %v405 = vunpack.c.l.b16 %v259
      %v406 = vunpack.c.h.b16 %v259
      %v407 = vunpack.c.l.b16 %v260
      %v408 = vunpack.c.h.b16 %v260
      %v409 = vunpack.c.l.b16 %v261
      %v410 = vunpack.c.h.b16 %v261
      %v411 = vunpack.c.l.b16 %v262
      %v412 = vunpack.c.h.b16 %v262
      %v413 = vpack.c.b16 %v383, %v381
      %v414 = vpack.c.b16 %v384, %v382
      %v415 = vpack.c.b16 %v387, %v385
      %v416 = vpack.c.b16 %v388, %v386
      %v417 = vpack.c.b16 %v391, %v389
      %v418 = vpack.c.b16 %v392, %v390
      %v419 = vpack.c.b16 %v395, %v393
      %v420 = vpack.c.b16 %v396, %v394
      %v421 = vpack.c.b16 %v399, %v397
      %v422 = vpack.c.b16 %v400, %v398
      %v423 = vpack.c.b16 %v403, %v401
      %v424 = vpack.c.b16 %v404, %v402
      %v425 = vpack.c.b16 %v407, %v405
      %v426 = vpack.c.b16 %v408, %v406
      %v427 = vpack.c.b16 %v411, %v409
      %v428 = vpack.c.b16 %v412, %v410
      %445 = vmatpush.bf16.msra.mxu0 %v427
      %446 = vmatpush.bf16.msra.mxu0 %v425
      %447 = vmatpush.bf16.msra.mxu0 %v423
      %448 = vmatpush.bf16.msra.mxu0 %v421
      %449 = vmatpush.bf16.msra.mxu0 %v419
      %450 = vmatpush.bf16.msra.mxu0 %v417
      %451 = vmatpush.bf16.msra.mxu0 %v415
      %452 = vmatpush.bf16.msra.mxu0 %v413
      %453 = vmatmul.bf16.gmra.mxu0 %v333
      %v454 = vpop.f32.mrf.mxu0
      %v455 = vadd.f32 %v265, %v454
      %v456 = vpop.f32.mrf.mxu0
      %v457 = vadd.f32 %v265, %v456
      %458 = vmatmul.bf16.gmra.mxu0 %v334
      %v459 = vpop.f32.mrf.mxu0
      %v460 = vadd.f32 %v265, %v459
      %v461 = vpop.f32.mrf.mxu0
      %v462 = vadd.f32 %v265, %v461
      %463 = vmatmul.bf16.gmra.mxu0 %v335
      %v464 = vpop.f32.mrf.mxu0
      %v465 = vadd.f32 %v265, %v464
      %v466 = vpop.f32.mrf.mxu0
      %v467 = vadd.f32 %v265, %v466
      %468 = vmatmul.bf16.gmra.mxu0 %v336
      %v469 = vpop.f32.mrf.mxu0
      %v470 = vadd.f32 %v265, %v469
      %v471 = vpop.f32.mrf.mxu0
      %v472 = vadd.f32 %v265, %v471
      %473 = vmatmul.bf16.gmra.mxu0 %v337
      %v474 = vpop.f32.mrf.mxu0
      %v475 = vadd.f32 %v265, %v474
      %v476 = vpop.f32.mrf.mxu0
      %v477 = vadd.f32 %v265, %v476
      %478 = vmatmul.bf16.gmra.mxu0 %v338
      %v479 = vpop.f32.mrf.mxu0
      %v480 = vadd.f32 %v265, %v479
      %v481 = vpop.f32.mrf.mxu0
      %v482 = vadd.f32 %v265, %v481
      %483 = vmatmul.bf16.gmra.mxu0 %v339
      %v484 = vpop.f32.mrf.mxu0
      %v485 = vadd.f32 %v265, %v484
      %v486 = vpop.f32.mrf.mxu0
      %v487 = vadd.f32 %v265, %v486
      %488 = vmatmul.bf16.gmra.mxu0 %v340
      %v489 = vpop.f32.mrf.mxu0
      %v490 = vadd.f32 %v265, %v489
      %v491 = vpop.f32.mrf.mxu0
      %v492 = vadd.f32 %v265, %v491
      %493 = vmatmul.bf16.gmra.mxu0 %v341
      %v494 = vpop.f32.mrf.mxu0
      %v495 = vadd.f32 %v265, %v494
      %v496 = vpop.f32.mrf.mxu0
      %v497 = vadd.f32 %v265, %v496
      %498 = vmatmul.bf16.gmra.mxu0 %v342
      %v499 = vpop.f32.mrf.mxu0
      %v500 = vadd.f32 %v265, %v499
      %v501 = vpop.f32.mrf.mxu0
      %v502 = vadd.f32 %v265, %v501
      %503 = vmatmul.bf16.gmra.mxu0 %v343
      %v504 = vpop.f32.mrf.mxu0
      %v505 = vadd.f32 %v265, %v504
      %v506 = vpop.f32.mrf.mxu0
      %v507 = vadd.f32 %v265, %v506
      %508 = vmatmul.bf16.gmra.mxu0 %v344
      %v509 = vpop.f32.mrf.mxu0
      %v510 = vadd.f32 %v265, %v509
      %v511 = vpop.f32.mrf.mxu0
      %v512 = vadd.f32 %v265, %v511
      %513 = vmatmul.bf16.gmra.mxu0 %v345
      %v514 = vpop.f32.mrf.mxu0
      %v515 = vadd.f32 %v265, %v514
      %v516 = vpop.f32.mrf.mxu0
      %v517 = vadd.f32 %v265, %v516
      %518 = vmatmul.bf16.gmra.mxu0 %v346
      %v519 = vpop.f32.mrf.mxu0
      %v520 = vadd.f32 %v265, %v519
      %v521 = vpop.f32.mrf.mxu0
      %v522 = vadd.f32 %v265, %v521
      %523 = vmatmul.bf16.gmra.mxu0 %v347
      %v524 = vpop.f32.mrf.mxu0
      %v525 = vadd.f32 %v265, %v524
      %v526 = vpop.f32.mrf.mxu0
      %v527 = vadd.f32 %v265, %v526
      %528 = vmatmul.bf16.gmra.mxu0 %v348
      %v529 = vpop.f32.mrf.mxu0
      %v530 = vadd.f32 %v265, %v529
      %v531 = vpop.f32.mrf.mxu0
      %v532 = vadd.f32 %v265, %v531
      %533 = vdwg.mxu0
      %534 = vmatpush.bf16.msra.mxu0 %v428
      %535 = vmatpush.bf16.msra.mxu0 %v426
      %536 = vmatpush.bf16.msra.mxu0 %v424
      %537 = vmatpush.bf16.msra.mxu0 %v422
      %538 = vmatpush.bf16.msra.mxu0 %v420
      %539 = vmatpush.bf16.msra.mxu0 %v418
      %540 = vmatpush.bf16.msra.mxu0 %v416
      %541 = vmatpush.bf16.msra.mxu0 %v414
      %542 = vmatmul.bf16.gmra.mxu0 %v333
      %v543 = vpop.f32.mrf.mxu0
      %v544 = vadd.f32 %v266, %v543
      %v545 = vpop.f32.mrf.mxu0
      %v546 = vadd.f32 %v266, %v545
      %547 = vmatmul.bf16.gmra.mxu0 %v334
      %v548 = vpop.f32.mrf.mxu0
      %v549 = vadd.f32 %v266, %v548
      %v550 = vpop.f32.mrf.mxu0
      %v551 = vadd.f32 %v266, %v550
      %552 = vmatmul.bf16.gmra.mxu0 %v335
      %v553 = vpop.f32.mrf.mxu0
      %v554 = vadd.f32 %v266, %v553
      %v555 = vpop.f32.mrf.mxu0
      %v556 = vadd.f32 %v266, %v555
      %557 = vmatmul.bf16.gmra.mxu0 %v336
      %v558 = vpop.f32.mrf.mxu0
      %v559 = vadd.f32 %v266, %v558
      %v560 = vpop.f32.mrf.mxu0
      %v561 = vadd.f32 %v266, %v560
      %562 = vmatmul.bf16.gmra.mxu0 %v337
      %v563 = vpop.f32.mrf.mxu0
      %v564 = vadd.f32 %v266, %v563
      %v565 = vpop.f32.mrf.mxu0
      %v566 = vadd.f32 %v266, %v565
      %567 = vmatmul.bf16.gmra.mxu0 %v338
      %v568 = vpop.f32.mrf.mxu0
      %v569 = vadd.f32 %v266, %v568
      %v570 = vpop.f32.mrf.mxu0
      %v571 = vadd.f32 %v266, %v570
      %572 = vmatmul.bf16.gmra.mxu0 %v339
      %v573 = vpop.f32.mrf.mxu0
      %v574 = vadd.f32 %v266, %v573
      %v575 = vpop.f32.mrf.mxu0
      %v576 = vadd.f32 %v266, %v575
      %577 = vmatmul.bf16.gmra.mxu0 %v340
      %v578 = vpop.f32.mrf.mxu0
      %v579 = vadd.f32 %v266, %v578
      %v580 = vpop.f32.mrf.mxu0
      %v581 = vadd.f32 %v266, %v580
      %582 = vmatmul.bf16.gmra.mxu0 %v341
      %v583 = vpop.f32.mrf.mxu0
      %v584 = vadd.f32 %v266, %v583
      %v585 = vpop.f32.mrf.mxu0
      %v586 = vadd.f32 %v266, %v585
      %587 = vmatmul.bf16.gmra.mxu0 %v342
      %v588 = vpop.f32.mrf.mxu0
      %v589 = vadd.f32 %v266, %v588
      %v590 = vpop.f32.mrf.mxu0
      %v591 = vadd.f32 %v266, %v590
      %592 = vmatmul.bf16.gmra.mxu0 %v343
      %v593 = vpop.f32.mrf.mxu0
      %v594 = vadd.f32 %v266, %v593
      %v595 = vpop.f32.mrf.mxu0
      %v596 = vadd.f32 %v266, %v595
      %597 = vmatmul.bf16.gmra.mxu0 %v344
      %v598 = vpop.f32.mrf.mxu0
      %v599 = vadd.f32 %v266, %v598
      %v600 = vpop.f32.mrf.mxu0
      %v601 = vadd.f32 %v266, %v600
      %602 = vmatmul.bf16.gmra.mxu0 %v345
      %v603 = vpop.f32.mrf.mxu0
      %v604 = vadd.f32 %v266, %v603
      %v605 = vpop.f32.mrf.mxu0
      %v606 = vadd.f32 %v266, %v605
      %607 = vmatmul.bf16.gmra.mxu0 %v346
      %v608 = vpop.f32.mrf.mxu0
      %v609 = vadd.f32 %v266, %v608
      %v610 = vpop.f32.mrf.mxu0
      %v611 = vadd.f32 %v266, %v610
      %612 = vmatmul.bf16.gmra.mxu0 %v347
      %v613 = vpop.f32.mrf.mxu0
      %v614 = vadd.f32 %v266, %v613
      %v615 = vpop.f32.mrf.mxu0
      %v616 = vadd.f32 %v266, %v615
      %617 = vmatmul.bf16.gmra.mxu0 %v348
      %v618 = vpop.f32.mrf.mxu0
      %v619 = vadd.f32 %v266, %v618
      %v620 = vpop.f32.mrf.mxu0
      %v621 = vadd.f32 %v266, %v620
      %622 = vdwg.mxu0
      %v623 = vmax.f32 %v455, 0.0
      %v624 = vmax.f32 %v457, 0.0
      %v625 = vmax.f32 %v460, 0.0
      %v626 = vmax.f32 %v462, 0.0
      %v627 = vmax.f32 %v465, 0.0
      %v628 = vmax.f32 %v467, 0.0
      %v629 = vmax.f32 %v470, 0.0
      %v630 = vmax.f32 %v472, 0.0
      %v631 = vmax.f32 %v475, 0.0
      %v632 = vmax.f32 %v477, 0.0
      %v633 = vmax.f32 %v480, 0.0
      %v634 = vmax.f32 %v482, 0.0
      %v635 = vmax.f32 %v485, 0.0
      %v636 = vmax.f32 %v487, 0.0
      %v637 = vmax.f32 %v490, 0.0
      %v638 = vmax.f32 %v492, 0.0
      %v639 = vmax.f32 %v495, 0.0
      %v640 = vmax.f32 %v497, 0.0
      %v641 = vmax.f32 %v500, 0.0
      %v642 = vmax.f32 %v502, 0.0
      %v643 = vmax.f32 %v505, 0.0
      %v644 = vmax.f32 %v507, 0.0
      %v645 = vmax.f32 %v510, 0.0
      %v646 = vmax.f32 %v512, 0.0
      %v647 = vmax.f32 %v515, 0.0
      %v648 = vmax.f32 %v517, 0.0
      %v649 = vmax.f32 %v520, 0.0
      %v650 = vmax.f32 %v522, 0.0
      %v651 = vmax.f32 %v525, 0.0
      %v652 = vmax.f32 %v527, 0.0
      %v653 = vmax.f32 %v530, 0.0
      %v654 = vmax.f32 %v532, 0.0
      %655 = vst [vmem:[%s207] sm:$0xff] %v623
      %656 = vst [vmem:[%s207 + $0x8] sm:$0xff] %v624
      %657 = vst [vmem:[%s207 + $0x10] sm:$0xff] %v625
      %658 = vst [vmem:[%s207 + $0x18] sm:$0xff] %v626
      %659 = vst [vmem:[%s207 + $0x20] sm:$0xff] %v627
      %660 = vst [vmem:[%s207 + $0x28] sm:$0xff] %v628
      %661 = vst [vmem:[%s207 + $0x30] sm:$0xff] %v629
      %662 = vst [vmem:[%s207 + $0x38] sm:$0xff] %v630
      %663 = vst [vmem:[%s207 + $0x40] sm:$0xff] %v631
      %664 = vst [vmem:[%s207 + $0x48] sm:$0xff] %v632
      %665 = vst [vmem:[%s207 + $0x50] sm:$0xff] %v633
      %666 = vst [vmem:[%s207 + $0x58] sm:$0xff] %v634
      %667 = vst [vmem:[%s207 + $0x60] sm:$0xff] %v635
      %668 = vst [vmem:[%s207 + $0x68] sm:$0xff] %v636
      %669 = vst [vmem:[%s207 + $0x70] sm:$0xff] %v637
      %670 = vst [vmem:[%s207 + $0x78] sm:$0xff] %v638
      %671 = vst [vmem:[%s207 + $0x80] sm:$0xff] %v639
      %672 = vst [vmem:[%s207 + $0x88] sm:$0xff] %v640
      %673 = vst [vmem:[%s207 + $0x90] sm:$0xff] %v641
      %674 = vst [vmem:[%s207 + $0x98] sm:$0xff] %v642
      %675 = vst [vmem:[%s207 + $0xa0] sm:$0xff] %v643
      %676 = vst [vmem:[%s207 + $0xa8] sm:$0xff] %v644
      %677 = vst [vmem:[%s207 + $0xb0] sm:$0xff] %v645
      %678 = vst [vmem:[%s207 + $0xb8] sm:$0xff] %v646
      %679 = vst [vmem:[%s207 + $0xc0] sm:$0xff] %v647
      %680 = vst [vmem:[%s207 + $0xc8] sm:$0xff] %v648
      %681 = vst [vmem:[%s207 + $0xd0] sm:$0xff] %v649
      %682 = vst [vmem:[%s207 + $0xd8] sm:$0xff] %v650
      %683 = vst [vmem:[%s207 + $0xe0] sm:$0xff] %v651
      %684 = vst [vmem:[%s207 + $0xe8] sm:$0xff] %v652
      %685 = vst [vmem:[%s207 + $0xf0] sm:$0xff] %v653
      %686 = vst [vmem:[%s207 + $0xf8] sm:$0xff] %v654
      %v687 = vpack.c.bf16 %v544, %v544
      %v688 = vpack.c.bf16 %v546, %v546
      %v689 = vpack.c.bf16 %v549, %v549
      %v690 = vpack.c.bf16 %v551, %v551
      %v691 = vpack.c.bf16 %v554, %v554
      %v692 = vpack.c.bf16 %v556, %v556
      %v693 = vpack.c.bf16 %v559, %v559
      %v694 = vpack.c.bf16 %v561, %v561
      %v695 = vpack.c.bf16 %v564, %v564
      %v696 = vpack.c.bf16 %v566, %v566
      %v697 = vpack.c.bf16 %v569, %v569
      %v698 = vpack.c.bf16 %v571, %v571
      %v699 = vpack.c.bf16 %v574, %v574
      %v700 = vpack.c.bf16 %v576, %v576
      %v701 = vpack.c.bf16 %v579, %v579
      %v702 = vpack.c.bf16 %v581, %v581
      %v703 = vpack.c.bf16 %v584, %v584
      %v704 = vpack.c.bf16 %v586, %v586
      %v705 = vpack.c.bf16 %v589, %v589
      %v706 = vpack.c.bf16 %v591, %v591
      %v707 = vpack.c.bf16 %v594, %v594
      %v708 = vpack.c.bf16 %v596, %v596
      %v709 = vpack.c.bf16 %v599, %v599
      %v710 = vpack.c.bf16 %v601, %v601
      %v711 = vpack.c.bf16 %v604, %v604
      %v712 = vpack.c.bf16 %v606, %v606
      %v713 = vpack.c.bf16 %v609, %v609
      %v714 = vpack.c.bf16 %v611, %v611
      %v715 = vpack.c.bf16 %v614, %v614
      %v716 = vpack.c.bf16 %v616, %v616
      %v717 = vpack.c.bf16 %v619, %v619
      %v718 = vpack.c.bf16 %v621, %v621
      %719 = vst [vmem:[%s213] sm:$0xf] %v687
      %720 = vst [vmem:[%s213 + $0x4] sm:$0xf] %v688
      %721 = vst [vmem:[%s213 + $0x8] sm:$0xf] %v689
      %722 = vst [vmem:[%s213 + $0xc] sm:$0xf] %v690
      %723 = vst [vmem:[%s213 + $0x10] sm:$0xf] %v691
      %724 = vst [vmem:[%s213 + $0x14] sm:$0xf] %v692
      %725 = vst [vmem:[%s213 + $0x18] sm:$0xf] %v693
      %726 = vst [vmem:[%s213 + $0x1c] sm:$0xf] %v694
      %727 = vst [vmem:[%s213 + $0x20] sm:$0xf] %v695
      %728 = vst [vmem:[%s213 + $0x24] sm:$0xf] %v696
      %729 = vst [vmem:[%s213 + $0x28] sm:$0xf] %v697
      %730 = vst [vmem:[%s213 + $0x2c] sm:$0xf] %v698
      %731 = vst [vmem:[%s213 + $0x30] sm:$0xf] %v699
      %732 = vst [vmem:[%s213 + $0x34] sm:$0xf] %v700
      %733 = vst [vmem:[%s213 + $0x38] sm:$0xf] %v701
      %734 = vst [vmem:[%s213 + $0x3c] sm:$0xf] %v702
      %735 = vst [vmem:[%s213 + $0x40] sm:$0xf] %v703
      %736 = vst [vmem:[%s213 + $0x44] sm:$0xf] %v704
      %737 = vst [vmem:[%s213 + $0x48] sm:$0xf] %v705
      %738 = vst [vmem:[%s213 + $0x4c] sm:$0xf] %v706
      %739 = vst [vmem:[%s213 + $0x50] sm:$0xf] %v707
      %740 = vst [vmem:[%s213 + $0x54] sm:$0xf] %v708
      %741 = vst [vmem:[%s213 + $0x58] sm:$0xf] %v709
      %742 = vst [vmem:[%s213 + $0x5c] sm:$0xf] %v710
      %743 = vst [vmem:[%s213 + $0x60] sm:$0xf] %v711
      %744 = vst [vmem:[%s213 + $0x64] sm:$0xf] %v712
      %745 = vst [vmem:[%s213 + $0x68] sm:$0xf] %v713
      %746 = vst [vmem:[%s213 + $0x6c] sm:$0xf] %v714
      %747 = vst [vmem:[%s213 + $0x70] sm:$0xf] %v715
      %748 = vst [vmem:[%s213 + $0x74] sm:$0xf] %v716
      %749 = vst [vmem:[%s213 + $0x78] sm:$0xf] %v717
      %750 = vst [vmem:[%s213 + $0x7c] sm:$0xf] %v718
      %s751 = smul.u32 32, %s16
      %p752 = scmp.lt.s32.totalorder %s751, 63
      %s753 = scalar_select %p752, %s751, 63
      %s754 = smul.addr %s753, 8
      %s755 = scalar_lea.vmem %s3, %s754
      %s756 = smul.u32 32, %s16
      %p757 = scmp.lt.s32.totalorder %s756, 63
      %s758 = scalar_select %p757, %s756, 63
      %s759 = smul.addr %s758, 4
      %s760 = scalar_lea.vmem %s4, %s759
      // Predicated region
      $region33: #{block_forward.2} parent=31 // pred_check
        %p761 = pneg %p102
      $region34: #{block_forward.2} parent=31 // pred_check_branch
        %763 = sbr.rel (%p761) target = $region36
      $region35: #{block_forward.2} parent=31 // pred_region
        %s764 = smul.u32 32, %s16
      $region36: #{block_forward.2} parent=31 // pred_fallthru
        _
      // Predicated region
      $region37: #{block_forward.2} parent=31 // pred_check
        %p765 = pneg %p128
      $region38: #{block_forward.2} parent=31 // pred_check_branch
        %767 = sbr.rel (%p765) target = $region40
      $region39: #{block_forward.2} parent=31 // pred_region
        %s768 = smul.u32 32, %s16
      $region40: #{block_forward.2} parent=31 // pred_fallthru
        _
    $region32: #{block_forward.2} parent=5 // pred_fallthru
      _
    %p769 = scmp.le.s32.totalorder 2, %s11
    // Predicated region
    $region41: #{block_forward.2} parent=5 // pred_check
      %p770 = pneg %p769
    $region42: #{block_forward.2} parent=5 // pred_check_branch
      %772 = sbr.rel (%p770) target = $region44
    $region43: #{block_forward.2} parent=5 // pred_region
      %s773 = ssub.s32 %s11, 2
      // Predicated region
      $region45: #{block_forward.2} parent=43 // pred_check
        %p774 = pneg %p108
      $region46: #{block_forward.2} parent=43 // pred_check_branch
        %776 = sbr.rel (%p774) target = $region48
      $region47: #{block_forward.2} parent=43 // pred_region
        %s777 = smul.u32 32, %s17
        %p778 = scmp.lt.s32.totalorder %s777, 63
        %s779 = scalar_select %p778, %s777, 63
        %s780 = smul.addr %s779, 8
        %s781 = scalar_lea.vmem %s3, %s780
      $region48: #{block_forward.2} parent=43 // pred_fallthru
        _
      // Predicated region
      $region49: #{block_forward.2} parent=43 // pred_check
        %p782 = pneg %p134
      $region50: #{block_forward.2} parent=43 // pred_check_branch
        %784 = sbr.rel (%p782) target = $region52
      $region51: #{block_forward.2} parent=43 // pred_region
        %s785 = smul.u32 32, %s17
        %p786 = scmp.lt.s32.totalorder %s785, 63
        %s787 = scalar_select %p786, %s785, 63
        %s788 = smul.addr %s787, 4
        %s789 = scalar_lea.vmem %s4, %s788
      $region52: #{block_forward.2} parent=43 // pred_fallthru
        _
    $region44: #{block_forward.2} parent=5 // pred_fallthru
      _
  $region6: #{block_forward.2} parent=0 // loop_footer
    %s15 = sadd.s32 1, %s11
  $region7: #{block_forward.2} parent=0 // loop_footer_branch
    %10 = sbr.rel target = $region3
  $region8: #{block_forward.2} parent=0 // loop_exit
    _

// kernel: block_forward.3
$region0: #{block_forward.3}
  #allocation0 [shape = 'u32[]', space=smem, size = 0x4, offset = 0x4, fixed_abs, tag = 'smem constant byte address 0x4 - core index']
  #allocation1 [shape = 'u32[72,128]{1,0:T(1,128)}', space=vmem, size = 0x9000, scoped, tag = 'internal scratch']
  #allocation2 [shape = 'f32[48,128]{1,0:T(8,128)}', space=vmem, size = 0x6000, scoped, tag = 'scratch operand']
  %s0 = inlined_call_operand.vmem [shape: f32[2,8,72,8], index: 0, kind: input, shape index: {}]
  %s1 = inlined_call_operand.vmem [shape: f32[3,9,8,128], index: 1, kind: input, shape index: {}]
  %s2 = inlined_call_operand.vmem [shape: f32[1,128], index: 2, kind: input, shape index: {}]
  %s3 = inlined_call_operand.vmem [shape: bf16[2,6,48,128], index: 3, kind: input, shape index: {}]
  %s4 = inlined_call_operand.vmem [shape: f32[2,6,48,128], index: 4, kind: output, shape index: {}]
  %s5 = sld [smem:[#allocation0]]
  $region57: #{block_forward.3} parent=0
    _
  %s7 = ssub.s32 1, %s5
  %s8 = scalar_select 0, %s7, %s5
  loop: start=0, step=1, limit=38
  $region2: #{block_forward.3} parent=0 // loop_pre_header
    _
  $region3: #{block_forward.3} parent=0 // loop_header
    %s10 = sphi 0, %s14
    %p11 = scmp.ge.s32.totalorder %s10, 38
    %s17 = sphi 0, %s36
    %s18 = sphi 0, %s32
    %s19 = sphi 0, %s28
    %s20 = sphi 0, %s17
    %s21 = sphi 0, %s18
    %s22 = sphi 0, %s19
    %s23 = sphi 0, %s20
    %s24 = sphi 0, %s21
    %s25 = sphi 0, %s22
    %s43 = sphi 0, %s45
    %s46 = sphi 0, %s43
    %s47 = sphi 0, %s46
    %s63 = sphi 0, %s47
    %s69 = sphi 0, %s71
    %s72 = sphi 0, %s69
    %s73 = sphi 0, %s72
    %s89 = sphi 0, %s73
    %s93 = sphi 0, %s93
    %s95 = sphi 0, %s93
    %s96 = sphi 0, %s95
    %s110 = sphi 0, %s96
    %s118 = sphi 0, %s120
    %s121 = sphi 0, %s118
    %s122 = sphi 0, %s121
    %s138 = sphi 0, %s122
    %s146 = sphi 0, %s148
    %s149 = sphi 0, %s146
    %s150 = sphi 0, %s149
    %s166 = sphi 0, %s150
  $region4: #{block_forward.3} parent=0 // loop_header_branch
    %13 = sbr.rel (%p11) target = $region8
  $region5: #{block_forward.3} parent=0 // loop_body
    %s15 = ssub.s32 %s10, 1
    %s16 = ssub.s32 %s10, 2
    %s26 = sadd.s32 1, %s19
    %p27 = scmp.ge.s32.totalorder %s26, 3
    %s28 = scalar_select %p27, 0, %s26
    %s29 = sadd.s32 1, %s18
    %s30 = scalar_select %p27, %s29, %s18
    %p31 = scmp.ge.s32.totalorder %s30, 6
    %s32 = scalar_select %p31, 0, %s30
    %s33 = sadd.s32 1, %s17
    %s34 = scalar_select %p31, %s33, %s17
    %p35 = scmp.ge.s32.totalorder %s34, 2
    %s36 = scalar_select %p35, 0, %s34
    %s37 = sadd.s32 %s18, %s19
    %s38 = sadd.s32 %s32, %s28
    %s39 = ssub.s32 %s17, %s36
    %s40 = ssub.s32 %s37, %s38
    %s41 = sor.u32 %s39, %s40
    %p42 = scmp.eq.s32.totalorder %s41, 0
    %s44 = sadd.s32 %s43, 1
    %s45 = scalar_select %p42, %s43, %s44
    %p48 = pneg %p42
    %p49 = scmp.eq.s32.totalorder %s10, 35
    %p50 = por %p48, %p49
    %p51 = scmp.ne.s32.totalorder %s43, %s46
    %p52 = scmp.eq.s32.totalorder %s10, 0
    %p53 = por %p51, %p52
    %p54 = scmp.ne.s32.totalorder %s43, %s46
    %p55 = scmp.eq.s32.totalorder %s15, 35
    %p56 = por %p54, %p55
    %p57 = scmp.ne.s32.totalorder %s46, %s47
    %p58 = scmp.eq.s32.totalorder %s15, 0
    %p59 = por %p57, %p58
    %p60 = scmp.ne.s32.totalorder %s46, %s47
    %p61 = scmp.eq.s32.totalorder %s16, 35
    %p62 = por %p60, %p61
    %p64 = scmp.ne.s32.totalorder %s47, %s63
    %p65 = scmp.eq.s32.totalorder %s16, 0
    %p66 = por %p64, %p65
    %s67 = ssub.s32 %s19, %s28
    %p68 = scmp.eq.s32.totalorder %s67, 0
    %s70 = sadd.s32 %s69, 1
    %s71 = scalar_select %p68, %s69, %s70
    %p74 = pneg %p68
    %p75 = scmp.eq.s32.totalorder %s10, 35
    %p76 = por %p74, %p75
    %p77 = scmp.ne.s32.totalorder %s69, %s72
    %p78 = scmp.eq.s32.totalorder %s10, 0
    %p79 = por %p77, %p78
    %p80 = scmp.ne.s32.totalorder %s69, %s72
    %p81 = scmp.eq.s32.totalorder %s15, 35
    %p82 = por %p80, %p81
    %p83 = scmp.ne.s32.totalorder %s72, %s73
    %p84 = scmp.eq.s32.totalorder %s15, 0
    %p85 = por %p83, %p84
    %p86 = scmp.ne.s32.totalorder %s72, %s73
    %p87 = scmp.eq.s32.totalorder %s16, 35
    %p88 = por %p86, %p87
    %p90 = scmp.ne.s32.totalorder %s73, %s89
    %p91 = scmp.eq.s32.totalorder %s16, 0
    %p92 = por %p90, %p91
    %s94 = sadd.s32 %s93, 1
    %p97 = scmp.eq.s32.totalorder %s10, 35
    %p98 = scmp.ne.s32.totalorder %s93, %s95
    %p99 = scmp.eq.s32.totalorder %s10, 0
    %p100 = por %p98, %p99
    %p101 = scmp.ne.s32.totalorder %s93, %s95
    %p102 = scmp.eq.s32.totalorder %s15, 35
    %p103 = por %p101, %p102
    %p104 = scmp.ne.s32.totalorder %s95, %s96
    %p105 = scmp.eq.s32.totalorder %s15, 0
    %p106 = por %p104, %p105
    %p107 = scmp.ne.s32.totalorder %s95, %s96
    %p108 = scmp.eq.s32.totalorder %s16, 35
    %p109 = por %p107, %p108
    %p111 = scmp.ne.s32.totalorder %s96, %s110
    %p112 = scmp.eq.s32.totalorder %s16, 0
    %p113 = por %p111, %p112
    %s114 = ssub.s32 %s17, %s36
    %s115 = ssub.s32 %s18, %s32
    %s116 = sor.u32 %s114, %s115
    %p117 = scmp.eq.s32.totalorder %s116, 0
    %s119 = sadd.s32 %s118, 1
    %s120 = scalar_select %p117, %s118, %s119
    %p123 = pneg %p117
    %p124 = scmp.eq.s32.totalorder %s10, 35
    %p125 = por %p123, %p124
    %p126 = scmp.ne.s32.totalorder %s118, %s121
    %p127 = scmp.eq.s32.totalorder %s10, 0
    %p128 = por %p126, %p127
    %p129 = scmp.ne.s32.totalorder %s118, %s121
    %p130 = scmp.eq.s32.totalorder %s15, 35
    %p131 = por %p129, %p130
    %p132 = scmp.ne.s32.totalorder %s121, %s122
    %p133 = scmp.eq.s32.totalorder %s15, 0
    %p134 = por %p132, %p133
    %p135 = scmp.ne.s32.totalorder %s121, %s122
    %p136 = scmp.eq.s32.totalorder %s16, 35
    %p137 = por %p135, %p136
    %p139 = scmp.ne.s32.totalorder %s122, %s138
    %p140 = scmp.eq.s32.totalorder %s16, 0
    %p141 = por %p139, %p140
    %s142 = ssub.s32 %s17, %s36
    %s143 = ssub.s32 %s18, %s32
    %s144 = sor.u32 %s142, %s143
    %p145 = scmp.eq.s32.totalorder %s144, 0
    %s147 = sadd.s32 %s146, 1
    %s148 = scalar_select %p145, %s146, %s147
    %p151 = pneg %p145
    %p152 = scmp.eq.s32.totalorder %s10, 35
    %p153 = por %p151, %p152
    %p154 = scmp.ne.s32.totalorder %s146, %s149
    %p155 = scmp.eq.s32.totalorder %s10, 0
    %p156 = por %p154, %p155
    %p157 = scmp.ne.s32.totalorder %s146, %s149
    %p158 = scmp.eq.s32.totalorder %s15, 35
    %p159 = por %p157, %p158
    %p160 = scmp.ne.s32.totalorder %s149, %s150
    %p161 = scmp.eq.s32.totalorder %s15, 0
    %p162 = por %p160, %p161
    %p163 = scmp.ne.s32.totalorder %s149, %s150
    %p164 = scmp.eq.s32.totalorder %s16, 35
    %p165 = por %p163, %p164
    %p167 = scmp.ne.s32.totalorder %s150, %s166
    %p168 = scmp.eq.s32.totalorder %s16, 0
    %p169 = por %p167, %p168
    %p170 = scmp.le.s32.totalorder 1, %s10
    %p171 = scmp.lt.s32.totalorder %s10, 37
    %p172 = pnand %p170, %p171
    %p173 = pneg %p172
    // Predicated region
    $region9: #{block_forward.3} parent=5 // pred_check
      _
    $region10: #{block_forward.3} parent=5 // pred_check_branch
      %175 = sbr.rel (%p172) target = $region12
    $region11: #{block_forward.3} parent=5 // pred_region
      %s176 = ssub.s32 %s10, 1
      // Predicated region
      $region13: #{block_forward.3} parent=11 // pred_check
        %p177 = pneg %p106
      $region14: #{block_forward.3} parent=11 // pred_check_branch
        %179 = sbr.rel (%p177) target = $region16
      $region15: #{block_forward.3} parent=11 // pred_region
        _
      $region16: #{block_forward.3} parent=11 // pred_fallthru
        _
    $region12: #{block_forward.3} parent=5 // pred_fallthru
      _
    %p180 = scmp.lt.s32.totalorder %s10, 36
    // Predicated region
    $region17: #{block_forward.3} parent=5 // pred_check
      %p181 = pneg %p180
    $region18: #{block_forward.3} parent=5 // pred_check_branch
      %183 = sbr.rel (%p181) target = $region20
    $region19: #{block_forward.3} parent=5 // pred_region
      // Predicated region
      $region21: #{block_forward.3} parent=19 // pred_check
        %p184 = pneg %p53
      $region22: #{block_forward.3} parent=19 // pred_check_branch
        %186 = sbr.rel (%p184) target = $region24
      $region23: #{block_forward.3} parent=19 // pred_region
        %s187 = sadd.s32 %s18, %s19
        %p188 = scmp.lt.s32.totalorder %s17, 1
        %s189 = scalar_select %p188, %s17, 1
        %p190 = scmp.lt.s32.totalorder %s187, 7
        %s191 = scalar_select %p190, %s187, 7
        %s192 = smul.addr %s191, 9
        %s193 = smul.addr %s189, 72
        %s194 = sadd.s32 %s192, %s193
        %s195 = smul.addr %s194, 8
        %s196 = scalar_lea.vmem %s0, %s195
        %s197 = sadd.s32 %s18, %s19
      $region24: #{block_forward.3} parent=19 // pred_fallthru
        _
      // Predicated region
      $region25: #{block_forward.3} parent=19 // pred_check
        %p198 = pneg %p79
      $region26: #{block_forward.3} parent=19 // pred_check_branch
        %200 = sbr.rel (%p198) target = $region28
      $region27: #{block_forward.3} parent=19 // pred_region
        %p201 = scmp.lt.s32.totalorder %s19, 2
        %s202 = scalar_select %p201, %s19, 2
        %s203 = smul.addr %s202, 9
        %s204 = smul.addr %s203, 8
        %s205 = scalar_lea.vmem %s1, %s204
      $region28: #{block_forward.3} parent=19 // pred_fallthru
        _
      // Predicated region
      $region29: #{block_forward.3} parent=19 // pred_check
        %p206 = pneg %p128
      $region30: #{block_forward.3} parent=19 // pred_check_branch
        %208 = sbr.rel (%p206) target = $region32
      $region31: #{block_forward.3} parent=19 // pred_region
        %p209 = scmp.lt.s32.totalorder %s17, 1
        %s210 = scalar_select %p209, %s17, 1
        %p211 = scmp.lt.s32.totalorder %s18, 5
        %s212 = scalar_select %p211, %s18, 5
        %s213 = smul.addr %s212, 6
        %s214 = smul.addr %s210, 36
        %s215 = sadd.s32 %s213, %s214
        %s216 = smul.addr %s215, 4
        %s217 = scalar_lea.vmem %s3, %s216
      $region32: #{block_forward.3} parent=19 // pred_fallthru
        _
    $region20: #{block_forward.3} parent=5 // pred_fallthru
      _
    %p218 = scmp.le.s32.totalorder 1, %s10
    %p219 = scmp.lt.s32.totalorder %s10, 37
    %p220 = pnand %p218, %p219
    %p221 = pneg %p220
    // Predicated region
    $region33: #{block_forward.3} parent=5 // pred_check
      _
    $region34: #{block_forward.3} parent=5 // pred_check_branch
      %223 = sbr.rel (%p220) target = $region36
    $region35: #{block_forward.3} parent=5 // pred_region
      %s224 = ssub.s32 %s10, 1
      %s225 = sadd.s32 %s21, %s22
      %p226 = scmp.lt.s32.totalorder %s20, 1
      %s227 = scalar_select %p226, %s20, 1
      %p228 = scmp.lt.s32.totalorder %s225, 7
      %s229 = scalar_select %p228, %s225, 7
      %s230 = smul.addr %s229, 9
      %s231 = smul.addr %s227, 72
      %s232 = sadd.s32 %s230, %s231
      %s233 = smul.addr %s232, 8
      %s234 = scalar_lea.vmem %s0, %s233
      %p235 = pneg %p59
      %p236 = pneg %p56
      %p237 = scmp.lt.s32.totalorder %s22, 2
      %s238 = scalar_select %p237, %s22, 2
      %s239 = smul.addr %s238, 9
      %s240 = smul.addr %s239, 8
      %s241 = scalar_lea.vmem %s1, %s240
      %p242 = pneg %p85
      %p243 = pneg %p82
      %p244 = pneg %p106
      %p245 = pneg %p103
      %p246 = scmp.lt.s32.totalorder %s20, 1
      %s247 = scalar_select %p246, %s20, 1
      %p248 = scmp.lt.s32.totalorder %s21, 5
      %s249 = scalar_select %p248, %s21, 5
      %s250 = smul.addr %s249, 6
      %s251 = smul.addr %s247, 36
      %s252 = sadd.s32 %s250, %s251
      %s253 = smul.addr %s252, 4
      %s254 = scalar_lea.vmem %s3, %s253
      %p255 = pneg %p134
      %p256 = pneg %p131
      %p257 = pneg %p162
      %p258 = pneg %p159
      %p259 = scmp.lt.s32.totalorder %s20, 1
      %s260 = scalar_select %p259, %s20, 1
      %p261 = scmp.lt.s32.totalorder %s21, 5
      %s262 = scalar_select %p261, %s21, 5
      %s263 = smul.addr %s262, 6
      %s264 = smul.addr %s260, 36
      %s265 = sadd.s32 %s263, %s264
      %s266 = smul.addr %s265, 8
      %s267 = scalar_lea.vmem %s4, %s266
      %s268 = sadd.s32 %s21, %s22
      %p269 = scmp.lt.s32.totalorder %s20, 1
      %s270 = scalar_select %p269, %s20, 1
      %p271 = scmp.lt.s32.totalorder %s268, 7
      %s272 = scalar_select %p271, %s268, 7
      %s273 = smul.addr %s272, 9
      %s274 = smul.addr %s270, 72
      %s275 = sadd.s32 %s273, %s274
      %s276 = smul.addr %s275, 8
      %s277 = scalar_lea.vmem %s0, %s276
      %s278 = sadd.s32 %s21, %s22
      %p279 = scmp.lt.s32.totalorder %s22, 2
      %s280 = scalar_select %p279, %s22, 2
      %s281 = smul.addr %s280, 9
      %s282 = smul.addr %s281, 8
      %s283 = scalar_lea.vmem %s1, %s282
      %p284 = scmp.lt.s32.totalorder %s20, 1
      %s285 = scalar_select %p284, %s20, 1
      %p286 = scmp.lt.s32.totalorder %s21, 5
      %s287 = scalar_select %p286, %s21, 5
      %s288 = smul.addr %s287, 6
      %s289 = smul.addr %s285, 36
      %s290 = sadd.s32 %s288, %s289
      %s291 = smul.addr %s290, 4
      %s292 = scalar_lea.vmem %s3, %s291
      %p293 = scmp.lt.s32.totalorder %s20, 1
      %s294 = scalar_select %p293, %s20, 1
      %p295 = scmp.lt.s32.totalorder %s21, 5
      %s296 = scalar_select %p295, %s21, 5
      %s297 = smul.addr %s296, 6
      %s298 = smul.addr %s294, 36
      %s299 = sadd.s32 %s297, %s298
      %s300 = smul.addr %s299, 8
      %s301 = scalar_lea.vmem %s4, %s300
      %p302 = scmp.eq.s32.totalorder %s22, 0
      // Predicated region
      $region37: #{block_forward.3} parent=35 // pred_check
        %p303 = pneg %p302
      $region38: #{block_forward.3} parent=35 // pred_check_branch
        %305 = sbr.rel (%p303) target = $region40
      $region39: #{block_forward.3} parent=35 // pred_region
        %306 = vst [vmem:[#allocation2] sm:$0xff] 0.0
        %307 = vst [vmem:[#allocation2 + $0x8] sm:$0xff] 0.0
        %308 = vst [vmem:[#allocation2 + $0x10] sm:$0xff] 0.0
        %309 = vst [vmem:[#allocation2 + $0x18] sm:$0xff] 0.0
        %310 = vst [vmem:[#allocation2 + $0x20] sm:$0xff] 0.0
        %311 = vst [vmem:[#allocation2 + $0x28] sm:$0xff] 0.0
      $region40: #{block_forward.3} parent=35 // pred_fallthru
        _
      %v312 = vld [vmem:[%s277] sm:$0xff]
      %v313 = vld [vmem:[%s277 + $0x8] sm:$0xff]
      %v314 = vld [vmem:[%s277 + $0x10] sm:$0xff]
      %v315 = vld [vmem:[%s277 + $0x18] sm:$0xff]
      %v316 = vld [vmem:[%s277 + $0x20] sm:$0xff]
      %v317 = vld [vmem:[%s277 + $0x28] sm:$0xff]
      %v318 = vld [vmem:[%s277 + $0x30] sm:$0xff]
      %v319 = vld [vmem:[%s277 + $0x38] sm:$0xff]
      %v320 = vld [vmem:[%s277 + $0x40] sm:$0xff]
      %v321 = vld [vmem:[#allocation2] sm:$0xff]
      %v322 = vld [vmem:[#allocation2 + $0x8] sm:$0xff]
      %v323 = vld [vmem:[#allocation2 + $0x10] sm:$0xff]
      %v324 = vld [vmem:[#allocation2 + $0x18] sm:$0xff]
      %v325 = vld [vmem:[#allocation2 + $0x20] sm:$0xff]
      %v326 = vld [vmem:[#allocation2 + $0x28] sm:$0xff]
      %v327 = vld [vmem:[%s283] sm:$0xff]
      %vm328 = vcmask 64512
      %v330 = vsel %vm328, %v312, 0
      %v333 = vsel %vm328, %v313, 0
      %v336 = vsel %vm328, %v314, 0
      %v339 = vsel %vm328, %v315, 0
      %v342 = vsel %vm328, %v316, 0
      %v345 = vsel %vm328, %v317, 0
      %347 = vmatpush.msra.mxu0 0.0
      %348 = vmatpush.msra.mxu0 0.0
      %349 = vmatpush.msra.mxu0 0.0
      %350 = vmatpush.msra.mxu0 0.0
      %351 = vmatpush.msra.mxu0 0.0
      %352 = vmatpush.msra.mxu0 0.0
      %353 = vmatpush.msra.mxu0 0.0
      %354 = vmatpush.msra.mxu0 0.0
      %355 = vmatpush.msra.mxu0 0.0
      %356 = vmatpush.msra.mxu0 0.0
      %357 = vmatpush.msra.mxu0 0.0
      %358 = vmatpush.msra.mxu0 0.0
      %359 = vmatpush.msra.mxu0 0.0
      %360 = vmatpush.msra.mxu0 0.0
      %361 = vmatpush.msra.mxu0 0.0
      %362 = vmatpush.msra.mxu0 %v327
      %363 = vmatmul.f32.gmra.mxu0 %v330
      %v364 = vpop.f32.mrf.mxu0
      %v365 = vadd.f32 0.0, %v364
      %366 = vmatmul.f32.gmra.mxu0 %v333
      %v367 = vpop.f32.mrf.mxu0
      %v368 = vadd.f32 0.0, %v367
      %369 = vmatmul.f32.gmra.mxu0 %v336
      %v370 = vpop.f32.mrf.mxu0
      %v371 = vadd.f32 0.0, %v370
      %372 = vmatmul.f32.gmra.mxu0 %v339
      %v373 = vpop.f32.mrf.mxu0
      %v374 = vadd.f32 0.0, %v373
      %375 = vmatmul.f32.gmra.mxu0 %v342
      %v376 = vpop.f32.mrf.mxu0
      %v377 = vadd.f32 0.0, %v376
      %378 = vmatmul.f32.gmra.mxu0 %v345
      %v379 = vpop.f32.mrf.mxu0
      %v380 = vadd.f32 0.0, %v379
      %381 = vdwg.mxu0
      %v382 = vadd.f32 %v321, %v365
      %v383 = vadd.f32 %v322, %v368
      %v384 = vadd.f32 %v323, %v371
      %v385 = vadd.f32 %v324, %v374
      %v386 = vadd.f32 %v325, %v377
      %v387 = vadd.f32 %v326, %v380
      %s388 = scalar_lea.vmem %s283, 8
      %v389 = vld [vmem:[%s388] sm:$0xff]
      %vm391 = vcmask 1046528
      %v392 = vrot.slane %v312, 1
      %v393 = vrot.slane %v313, 1
      %v394 = vsel %vm391, %v392, %v393
      %v395 = vrot.slane %v314, 1
      %v396 = vsel %vm391, %v393, %v395
      %v397 = vrot.slane %v315, 1
      %v398 = vsel %vm391, %v395, %v397
      %v399 = vrot.slane %v316, 1
      %v400 = vsel %vm391, %v397, %v399
      %v401 = vrot.slane %v317, 1
      %v402 = vsel %vm391, %v399, %v401
      %v403 = vrot.slane %v318, 1
      %v404 = vsel %vm391, %v401, %v403
      %v405 = vsel %vm328, %v394, 0
      %v407 = vsel %vm328, %v396, 0
      %v409 = vsel %vm328, %v398, 0
      %v411 = vsel %vm328, %v400, 0
      %v413 = vsel %vm328, %v402, 0
      %v415 = vsel %vm328, %v404, 0
      %417 = vmatpush.msra.mxu0 0.0
      %418 = vmatpush.msra.mxu0 0.0
      %419 = vmatpush.msra.mxu0 0.0
      %420 = vmatpush.msra.mxu0 0.0
      %421 = vmatpush.msra.mxu0 0.0
      %422 = vmatpush.msra.mxu0 0.0
      %423 = vmatpush.msra.mxu0 0.0
      %424 = vmatpush.msra.mxu0 0.0
      %425 = vmatpush.msra.mxu0 0.0
      %426 = vmatpush.msra.mxu0 0.0
      %427 = vmatpush.msra.mxu0 0.0
      %428 = vmatpush.msra.mxu0 0.0
      %429 = vmatpush.msra.mxu0 0.0
      %430 = vmatpush.msra.mxu0 0.0
      %431 = vmatpush.msra.mxu0 0.0
      %432 = vmatpush.msra.mxu0 %v389
      %433 = vmatmul.f32.gmra.mxu0 %v405
      %v434 = vpop.f32.mrf.mxu0
      %v435 = vadd.f32 0.0, %v434
      %436 = vmatmul.f32.gmra.mxu0 %v407
      %v437 = vpop.f32.mrf.mxu0
      %v438 = vadd.f32 0.0, %v437
      %439 = vmatmul.f32.gmra.mxu0 %v409
      %v440 = vpop.f32.mrf.mxu0
      %v441 = vadd.f32 0.0, %v440
      %442 = vmatmul.f32.gmra.mxu0 %v411
      %v443 = vpop.f32.mrf.mxu0
      %v444 = vadd.f32 0.0, %v443
      %445 = vmatmul.f32.gmra.mxu0 %v413
      %v446 = vpop.f32.mrf.mxu0
      %v447 = vadd.f32 0.0, %v446
      %448 = vmatmul.f32.gmra.mxu0 %v415
      %v449 = vpop.f32.mrf.mxu0
      %v450 = vadd.f32 0.0, %v449
      %451 = vdwg.mxu0
      %v452 = vadd.f32 %v382, %v435
      %v453 = vadd.f32 %v383, %v438
      %v454 = vadd.f32 %v384, %v441
      %v455 = vadd.f32 %v385, %v444
      %v456 = vadd.f32 %v386, %v447
      %v457 = vadd.f32 %v387, %v450
      %s458 = scalar_lea.vmem %s283, 16
      %v459 = vld [vmem:[%s458] sm:$0xff]
      %vm460 = vcmask 1045504
      %v461 = vrot.slane %v312, 2
      %v462 = vrot.slane %v313, 2
      %v463 = vsel %vm460, %v461, %v462
      %v464 = vrot.slane %v314, 2
      %v465 = vsel %vm460, %v462, %v464
      %v466 = vrot.slane %v315, 2
      %v467 = vsel %vm460, %v464, %v466
      %v468 = vrot.slane %v316, 2
      %v469 = vsel %vm460, %v466, %v468
      %v470 = vrot.slane %v317, 2
      %v471 = vsel %vm460, %v468, %v470
      %v472 = vrot.slane %v318, 2
      %v473 = vsel %vm460, %v470, %v472
      %v474 = vsel %vm328, %v463, 0
      %v476 = vsel %vm328, %v465, 0
      %v478 = vsel %vm328, %v467, 0
      %v480 = vsel %vm328, %v469, 0
      %v482 = vsel %vm328, %v471, 0
      %v484 = vsel %vm328, %v473, 0
      %486 = vmatpush.msra.mxu0 0.0
      %487 = vmatpush.msra.mxu0 0.0
      %488 = vmatpush.msra.mxu0 0.0
      %489 = vmatpush.msra.mxu0 0.0
      %490 = vmatpush.msra.mxu0 0.0
      %491 = vmatpush.msra.mxu0 0.0
      %492 = vmatpush.msra.mxu0 0.0
      %493 = vmatpush.msra.mxu0 0.0
      %494 = vmatpush.msra.mxu0 0.0
      %495 = vmatpush.msra.mxu0 0.0
      %496 = vmatpush.msra.mxu0 0.0
      %497 = vmatpush.msra.mxu0 0.0
      %498 = vmatpush.msra.mxu0 0.0
      %499 = vmatpush.msra.mxu0 0.0
      %500 = vmatpush.msra.mxu0 0.0
      %501 = vmatpush.msra.mxu0 %v459
      %502 = vmatmul.f32.gmra.mxu0 %v474
      %v503 = vpop.f32.mrf.mxu0
      %v504 = vadd.f32 0.0, %v503
      %505 = vmatmul.f32.gmra.mxu0 %v476
      %v506 = vpop.f32.mrf.mxu0
      %v507 = vadd.f32 0.0, %v506
      %508 = vmatmul.f32.gmra.mxu0 %v478
      %v509 = vpop.f32.mrf.mxu0
      %v510 = vadd.f32 0.0, %v509
      %511 = vmatmul.f32.gmra.mxu0 %v480
      %v512 = vpop.f32.mrf.mxu0
      %v513 = vadd.f32 0.0, %v512
      %514 = vmatmul.f32.gmra.mxu0 %v482
      %v515 = vpop.f32.mrf.mxu0
      %v516 = vadd.f32 0.0, %v515
      %517 = vmatmul.f32.gmra.mxu0 %v484
      %v518 = vpop.f32.mrf.mxu0
      %v519 = vadd.f32 0.0, %v518
      %520 = vdwg.mxu0
      %v521 = vadd.f32 %v452, %v504
      %v522 = vadd.f32 %v453, %v507
      %v523 = vadd.f32 %v454, %v510
      %v524 = vadd.f32 %v455, %v513
      %v525 = vadd.f32 %v456, %v516
      %v526 = vadd.f32 %v457, %v519
      %s527 = scalar_lea.vmem %s283, 24
      %v528 = vld [vmem:[%s527] sm:$0xff]
      %v529 = vsel %vm328, %v318, 0
      %531 = vmatpush.msra.mxu0 0.0
      %532 = vmatpush.msra.mxu0 0.0
      %533 = vmatpush.msra.mxu0 0.0
      %534 = vmatpush.msra.mxu0 0.0
      %535 = vmatpush.msra.mxu0 0.0
      %536 = vmatpush.msra.mxu0 0.0
      %537 = vmatpush.msra.mxu0 0.0
      %538 = vmatpush.msra.mxu0 0.0
      %539 = vmatpush.msra.mxu0 0.0
      %540 = vmatpush.msra.mxu0 0.0
      %541 = vmatpush.msra.mxu0 0.0
      %542 = vmatpush.msra.mxu0 0.0
      %543 = vmatpush.msra.mxu0 0.0
      %544 = vmatpush.msra.mxu0 0.0
      %545 = vmatpush.msra.mxu0 0.0
      %546 = vmatpush.msra.mxu0 %v528
      %547 = vmatmul.f32.gmra.mxu0 %v333
      %v548 = vpop.f32.mrf.mxu0
      %v549 = vadd.f32 0.0, %v548
      %550 = vmatmul.f32.gmra.mxu0 %v336
      %v551 = vpop.f32.mrf.mxu0
      %v552 = vadd.f32 0.0, %v551
      %553 = vmatmul.f32.gmra.mxu0 %v339
      %v554 = vpop.f32.mrf.mxu0
      %v555 = vadd.f32 0.0, %v554
      %556 = vmatmul.f32.gmra.mxu0 %v342
      %v557 = vpop.f32.mrf.mxu0
      %v558 = vadd.f32 0.0, %v557
      %559 = vmatmul.f32.gmra.mxu0 %v345
      %v560 = vpop.f32.mrf.mxu0
      %v561 = vadd.f32 0.0, %v560
      %562 = vmatmul.f32.gmra.mxu0 %v529
      %v563 = vpop.f32.mrf.mxu0
      %v564 = vadd.f32 0.0, %v563
      %565 = vdwg.mxu0
      %v566 = vadd.f32 %v521, %v549
      %v567 = vadd.f32 %v522, %v552
      %v568 = vadd.f32 %v523, %v555
      %v569 = vadd.f32 %v524, %v558
      %v570 = vadd.f32 %v525, %v561
      %v571 = vadd.f32 %v526, %v564
      %s572 = scalar_lea.vmem %s283, 32
      %v573 = vld [vmem:[%s572] sm:$0xff]
      %v575 = vrot.slane %v319, 1
      %v576 = vsel %vm391, %v403, %v575
      %v577 = vsel %vm328, %v576, 0
      %579 = vmatpush.msra.mxu0 0.0
      %580 = vmatpush.msra.mxu0 0.0
      %581 = vmatpush.msra.mxu0 0.0
      %582 = vmatpush.msra.mxu0 0.0
      %583 = vmatpush.msra.mxu0 0.0
      %584 = vmatpush.msra.mxu0 0.0
      %585 = vmatpush.msra.mxu0 0.0
      %586 = vmatpush.msra.mxu0 0.0
      %587 = vmatpush.msra.mxu0 0.0
      %588 = vmatpush.msra.mxu0 0.0
      %589 = vmatpush.msra.mxu0 0.0
      %590 = vmatpush.msra.mxu0 0.0
      %591 = vmatpush.msra.mxu0 0.0
      %592 = vmatpush.msra.mxu0 0.0
      %593 = vmatpush.msra.mxu0 0.0
      %594 = vmatpush.msra.mxu0 %v573
      %595 = vmatmul.f32.gmra.mxu0 %v407
      %v596 = vpop.f32.mrf.mxu0
      %v597 = vadd.f32 0.0, %v596
      %598 = vmatmul.f32.gmra.mxu0 %v409
      %v599 = vpop.f32.mrf.mxu0
      %v600 = vadd.f32 0.0, %v599
      %601 = vmatmul.f32.gmra.mxu0 %v411
      %v602 = vpop.f32.mrf.mxu0
      %v603 = vadd.f32 0.0, %v602
      %604 = vmatmul.f32.gmra.mxu0 %v413
      %v605 = vpop.f32.mrf.mxu0
      %v606 = vadd.f32 0.0, %v605
      %607 = vmatmul.f32.gmra.mxu0 %v415
      %v608 = vpop.f32.mrf.mxu0
      %v609 = vadd.f32 0.0, %v608
      %610 = vmatmul.f32.gmra.mxu0 %v577
      %v611 = vpop.f32.mrf.mxu0
      %v612 = vadd.f32 0.0, %v611
      %613 = vdwg.mxu0
      %v614 = vadd.f32 %v566, %v597
      %v615 = vadd.f32 %v567, %v600
      %v616 = vadd.f32 %v568, %v603
      %v617 = vadd.f32 %v569, %v606
      %v618 = vadd.f32 %v570, %v609
      %v619 = vadd.f32 %v571, %v612
      %s620 = scalar_lea.vmem %s283, 40
      %v621 = vld [vmem:[%s620] sm:$0xff]
      %v622 = vrot.slane %v319, 2
      %v623 = vsel %vm460, %v472, %v622
      %v624 = vsel %vm328, %v623, 0
      %626 = vmatpush.msra.mxu0 0.0
      %627 = vmatpush.msra.mxu0 0.0
      %628 = vmatpush.msra.mxu0 0.0
      %629 = vmatpush.msra.mxu0 0.0
      %630 = vmatpush.msra.mxu0 0.0
      %631 = vmatpush.msra.mxu0 0.0
      %632 = vmatpush.msra.mxu0 0.0
      %633 = vmatpush.msra.mxu0 0.0
      %634 = vmatpush.msra.mxu0 0.0
      %635 = vmatpush.msra.mxu0 0.0
      %636 = vmatpush.msra.mxu0 0.0
      %637 = vmatpush.msra.mxu0 0.0
      %638 = vmatpush.msra.mxu0 0.0
      %639 = vmatpush.msra.mxu0 0.0
      %640 = vmatpush.msra.mxu0 0.0
      %641 = vmatpush.msra.mxu0 %v621
      %642 = vmatmul.f32.gmra.mxu0 %v476
      %v643 = vpop.f32.mrf.mxu0
      %v644 = vadd.f32 0.0, %v643
      %645 = vmatmul.f32.gmra.mxu0 %v478
      %v646 = vpop.f32.mrf.mxu0
      %v647 = vadd.f32 0.0, %v646
      %648 = vmatmul.f32.gmra.mxu0 %v480
      %v649 = vpop.f32.mrf.mxu0
      %v650 = vadd.f32 0.0, %v649
      %651 = vmatmul.f32.gmra.mxu0 %v482
      %v652 = vpop.f32.mrf.mxu0
      %v653 = vadd.f32 0.0, %v652
      %654 = vmatmul.f32.gmra.mxu0 %v484
      %v655 = vpop.f32.mrf.mxu0
      %v656 = vadd.f32 0.0, %v655
      %657 = vmatmul.f32.gmra.mxu0 %v624
      %v658 = vpop.f32.mrf.mxu0
      %v659 = vadd.f32 0.0, %v658
      %660 = vdwg.mxu0
      %v661 = vadd.f32 %v614, %v644
      %v662 = vadd.f32 %v615, %v647
      %v663 = vadd.f32 %v616, %v650
      %v664 = vadd.f32 %v617, %v653
      %v665 = vadd.f32 %v618, %v656
      %v666 = vadd.f32 %v619, %v659
      %s667 = scalar_lea.vmem %s283, 48
      %v668 = vld [vmem:[%s667] sm:$0xff]
      %v669 = vsel %vm328, %v319, 0
      %671 = vmatpush.msra.mxu0 0.0
      %672 = vmatpush.msra.mxu0 0.0
      %673 = vmatpush.msra.mxu0 0.0
      %674 = vmatpush.msra.mxu0 0.0
      %675 = vmatpush.msra.mxu0 0.0
      %676 = vmatpush.msra.mxu0 0.0
      %677 = vmatpush.msra.mxu0 0.0
      %678 = vmatpush.msra.mxu0 0.0
      %679 = vmatpush.msra.mxu0 0.0
      %680 = vmatpush.msra.mxu0 0.0
      %681 = vmatpush.msra.mxu0 0.0
      %682 = vmatpush.msra.mxu0 0.0
      %683 = vmatpush.msra.mxu0 0.0
      %684 = vmatpush.msra.mxu0 0.0
      %685 = vmatpush.msra.mxu0 0.0
      %686 = vmatpush.msra.mxu0 %v668
      %687 = vmatmul.f32.gmra.mxu0 %v336
      %v688 = vpop.f32.mrf.mxu0
      %v689 = vadd.f32 0.0, %v688
      %690 = vmatmul.f32.gmra.mxu0 %v339
      %v691 = vpop.f32.mrf.mxu0
      %v692 = vadd.f32 0.0, %v691
      %693 = vmatmul.f32.gmra.mxu0 %v342
      %v694 = vpop.f32.mrf.mxu0
      %v695 = vadd.f32 0.0, %v694
      %696 = vmatmul.f32.gmra.mxu0 %v345
      %v697 = vpop.f32.mrf.mxu0
      %v698 = vadd.f32 0.0, %v697
      %699 = vmatmul.f32.gmra.mxu0 %v529
      %v700 = vpop.f32.mrf.mxu0
      %v701 = vadd.f32 0.0, %v700
      %702 = vmatmul.f32.gmra.mxu0 %v669
      %v703 = vpop.f32.mrf.mxu0
      %v704 = vadd.f32 0.0, %v703
      %705 = vdwg.mxu0
      %v706 = vadd.f32 %v661, %v689
      %v707 = vadd.f32 %v662, %v692
      %v708 = vadd.f32 %v663, %v695
      %v709 = vadd.f32 %v664, %v698
      %v710 = vadd.f32 %v665, %v701
      %v711 = vadd.f32 %v666, %v704
      %s712 = scalar_lea.vmem %s283, 56
      %v713 = vld [vmem:[%s712] sm:$0xff]
      %v715 = vrot.slane %v320, 1
      %v716 = vsel %vm391, %v575, %v715
      %v717 = vsel %vm328, %v716, 0
      %719 = vmatpush.msra.mxu0 0.0
      %720 = vmatpush.msra.mxu0 0.0
      %721 = vmatpush.msra.mxu0 0.0
      %722 = vmatpush.msra.mxu0 0.0
      %723 = vmatpush.msra.mxu0 0.0
      %724 = vmatpush.msra.mxu0 0.0
      %725 = vmatpush.msra.mxu0 0.0
      %726 = vmatpush.msra.mxu0 0.0
      %727 = vmatpush.msra.mxu0 0.0
      %728 = vmatpush.msra.mxu0 0.0
      %729 = vmatpush.msra.mxu0 0.0
      %730 = vmatpush.msra.mxu0 0.0
      %731 = vmatpush.msra.mxu0 0.0
      %732 = vmatpush.msra.mxu0 0.0
      %733 = vmatpush.msra.mxu0 0.0
      %734 = vmatpush.msra.mxu0 %v713
      %735 = vmatmul.f32.gmra.mxu0 %v409
      %v736 = vpop.f32.mrf.mxu0
      %v737 = vadd.f32 0.0, %v736
      %738 = vmatmul.f32.gmra.mxu0 %v411
      %v739 = vpop.f32.mrf.mxu0
      %v740 = vadd.f32 0.0, %v739
      %741 = vmatmul.f32.gmra.mxu0 %v413
      %v742 = vpop.f32.mrf.mxu0
      %v743 = vadd.f32 0.0, %v742
      %744 = vmatmul.f32.gmra.mxu0 %v415
      %v745 = vpop.f32.mrf.mxu0
      %v746 = vadd.f32 0.0, %v745
      %747 = vmatmul.f32.gmra.mxu0 %v577
      %v748 = vpop.f32.mrf.mxu0
      %v749 = vadd.f32 0.0, %v748
      %750 = vmatmul.f32.gmra.mxu0 %v717
      %v751 = vpop.f32.mrf.mxu0
      %v752 = vadd.f32 0.0, %v751
      %753 = vdwg.mxu0
      %v754 = vadd.f32 %v706, %v737
      %v755 = vadd.f32 %v707, %v740
      %v756 = vadd.f32 %v708, %v743
      %v757 = vadd.f32 %v709, %v746
      %v758 = vadd.f32 %v710, %v749
      %v759 = vadd.f32 %v711, %v752
      %s760 = scalar_lea.vmem %s283, 64
      %v761 = vld [vmem:[%s760] sm:$0xff]
      %v762 = vrot.slane %v320, 2
      %v763 = vsel %vm460, %v622, %v762
      %v764 = vsel %vm328, %v763, 0
      %766 = vmatpush.msra.mxu0 0.0
      %767 = vmatpush.msra.mxu0 0.0
      %768 = vmatpush.msra.mxu0 0.0
      %769 = vmatpush.msra.mxu0 0.0
      %770 = vmatpush.msra.mxu0 0.0
      %771 = vmatpush.msra.mxu0 0.0
      %772 = vmatpush.msra.mxu0 0.0
      %773 = vmatpush.msra.mxu0 0.0
      %774 = vmatpush.msra.mxu0 0.0
      %775 = vmatpush.msra.mxu0 0.0
      %776 = vmatpush.msra.mxu0 0.0
      %777 = vmatpush.msra.mxu0 0.0
      %778 = vmatpush.msra.mxu0 0.0
      %779 = vmatpush.msra.mxu0 0.0
      %780 = vmatpush.msra.mxu0 0.0
      %781 = vmatpush.msra.mxu0 %v761
      %782 = vmatmul.f32.gmra.mxu0 %v478
      %v783 = vpop.f32.mrf.mxu0
      %v784 = vadd.f32 0.0, %v783
      %785 = vmatmul.f32.gmra.mxu0 %v480
      %v786 = vpop.f32.mrf.mxu0
      %v787 = vadd.f32 0.0, %v786
      %788 = vmatmul.f32.gmra.mxu0 %v482
      %v789 = vpop.f32.mrf.mxu0
      %v790 = vadd.f32 0.0, %v789
      %791 = vmatmul.f32.gmra.mxu0 %v484
      %v792 = vpop.f32.mrf.mxu0
      %v793 = vadd.f32 0.0, %v792
      %794 = vmatmul.f32.gmra.mxu0 %v624
      %v795 = vpop.f32.mrf.mxu0
      %v796 = vadd.f32 0.0, %v795
      %797 = vmatmul.f32.gmra.mxu0 %v764
      %v798 = vpop.f32.mrf.mxu0
      %v799 = vadd.f32 0.0, %v798
      %800 = vdwg.mxu0
      %v801 = vadd.f32 %v754, %v784
      %v802 = vadd.f32 %v755, %v787
      %v803 = vadd.f32 %v756, %v790
      %v804 = vadd.f32 %v757, %v793
      %v805 = vadd.f32 %v758, %v796
      %v806 = vadd.f32 %v759, %v799
      %807 = vst [vmem:[#allocation2] sm:$0xff] %v801
      %808 = vst [vmem:[#allocation2 + $0x8] sm:$0xff] %v802
      %809 = vst [vmem:[#allocation2 + $0x10] sm:$0xff] %v803
      %810 = vst [vmem:[#allocation2 + $0x18] sm:$0xff] %v804
      %811 = vst [vmem:[#allocation2 + $0x20] sm:$0xff] %v805
      %812 = vst [vmem:[#allocation2 + $0x28] sm:$0xff] %v806
      %p813 = scmp.eq.s32.totalorder %s22, 2
      // Predicated region
      $region41: #{block_forward.3} parent=35 // pred_check
        %p814 = pneg %p813
      $region42: #{block_forward.3} parent=35 // pred_check_branch
        %816 = sbr.rel (%p814) target = $region44
      $region43: #{block_forward.3} parent=35 // pred_region
        %v817 = vld [vmem:[#allocation2] sm:$0xff]
        %v818 = vld [vmem:[#allocation2 + $0x8] sm:$0xff]
        %v819 = vld [vmem:[#allocation2 + $0x10] sm:$0xff]
        %v820 = vld [vmem:[#allocation2 + $0x18] sm:$0xff]
        %v821 = vld [vmem:[#allocation2 + $0x20] sm:$0xff]
        %v822 = vld [vmem:[#allocation2 + $0x28] sm:$0xff]
        %v823 = vld [vmem:[%s2] sm:$0x1]
        %v825 = vperm.slane %v823, 0
        %v827 = vadd.f32 %v817, %v825
        %v828 = vadd.f32 %v818, %v825
        %v829 = vadd.f32 %v819, %v825
        %v830 = vadd.f32 %v820, %v825
        %v831 = vadd.f32 %v821, %v825
        %v832 = vadd.f32 %v822, %v825
        %v833 = vld [vmem:[%s292] sm:$0xf]
        %v834 = vld [vmem:[%s292 + $0x4] sm:$0xf]
        %v835 = vld [vmem:[%s292 + $0x8] sm:$0xf]
        %v836 = vld [vmem:[%s292 + $0xc] sm:$0xf]
        %v837 = vld [vmem:[%s292 + $0x10] sm:$0xf]
        %v838 = vld [vmem:[%s292 + $0x14] sm:$0xf]
        %v839 = vunpack.c.l.bf16 %v833
        %v840 = vunpack.c.l.bf16 %v834
        %v841 = vunpack.c.l.bf16 %v835
        %v842 = vunpack.c.l.bf16 %v836
        %v843 = vunpack.c.l.bf16 %v837
        %v844 = vunpack.c.l.bf16 %v838
        %v845 = vadd.f32 %v827, %v839
        %v846 = vadd.f32 %v828, %v840
        %v847 = vadd.f32 %v829, %v841
        %v848 = vadd.f32 %v830, %v842
        %v849 = vadd.f32 %v831, %v843
        %v850 = vadd.f32 %v832, %v844
        %v851 = vmax.f32 %v845, 0.0
        %v852 = vmax.f32 %v846, 0.0
        %v853 = vmax.f32 %v847, 0.0
        %v854 = vmax.f32 %v848, 0.0
        %v855 = vmax.f32 %v849, 0.0
        %v856 = vmax.f32 %v850, 0.0
        %857 = vst [vmem:[%s301] sm:$0xff] %v851
        %858 = vst [vmem:[%s301 + $0x8] sm:$0xff] %v852
        %859 = vst [vmem:[%s301 + $0x10] sm:$0xff] %v853
        %860 = vst [vmem:[%s301 + $0x18] sm:$0xff] %v854
        %861 = vst [vmem:[%s301 + $0x20] sm:$0xff] %v855
        %862 = vst [vmem:[%s301 + $0x28] sm:$0xff] %v856
      $region44: #{block_forward.3} parent=35 // pred_fallthru
        _
      %p863 = scmp.lt.s32.totalorder %s20, 1
      %s864 = scalar_select %p863, %s20, 1
      %p865 = scmp.lt.s32.totalorder %s21, 5
      %s866 = scalar_select %p865, %s21, 5
      %s867 = smul.addr %s866, 6
      %s868 = smul.addr %s864, 36
      %s869 = sadd.s32 %s867, %s868
      %s870 = smul.addr %s869, 8
      %s871 = scalar_lea.vmem %s4, %s870
      // Predicated region
      $region45: #{block_forward.3} parent=35 // pred_check
        %p872 = pneg %p159
      $region46: #{block_forward.3} parent=35 // pred_check_branch
        %874 = sbr.rel (%p872) target = $region48
      $region47: #{block_forward.3} parent=35 // pred_region
        _
      $region48: #{block_forward.3} parent=35 // pred_fallthru
        _
    $region36: #{block_forward.3} parent=5 // pred_fallthru
      _
    %p875 = scmp.le.s32.totalorder 2, %s10
    // Predicated region
    $region49: #{block_forward.3} parent=5 // pred_check
      %p876 = pneg %p875
    $region50: #{block_forward.3} parent=5 // pred_check_branch
      %878 = sbr.rel (%p876) target = $region52
    $region51: #{block_forward.3} parent=5 // pred_region
      %s879 = ssub.s32 %s10, 2
      // Predicated region
      $region53: #{block_forward.3} parent=51 // pred_check
        %p880 = pneg %p165
      $region54: #{block_forward.3} parent=51 // pred_check_branch
        %882 = sbr.rel (%p880) target = $region56
      $region55: #{block_forward.3} parent=51 // pred_region
        %p883 = scmp.lt.s32.totalorder %s23, 1
        %s884 = scalar_select %p883, %s23, 1
        %p885 = scmp.lt.s32.totalorder %s24, 5
        %s886 = scalar_select %p885, %s24, 5
        %s887 = smul.addr %s886, 6
        %s888 = smul.addr %s884, 36
        %s889 = sadd.s32 %s887, %s888
        %s890 = smul.addr %s889, 8
        %s891 = scalar_lea.vmem %s4, %s890
      $region56: #{block_forward.3} parent=51 // pred_fallthru
        _
    $region52: #{block_forward.3} parent=5 // pred_fallthru
      _
  $region6: #{block_forward.3} parent=0 // loop_footer
    %s14 = sadd.s32 1, %s10
  $region7: #{block_forward.3} parent=0 // loop_footer_branch
    %9 = sbr.rel target = $region3
  $region8: #{block_forward.3} parent=0 // loop_exit
    _

</llo_original>
